<compile_context>
chip_gen: v7x
topology: tpu7x:2x2x1
jax: 0.10.0
libtpu: 0.0.40
codegen_flags: <defaults>
</compile_context>

<pallas_src>
import functools

import numpy as np

import jax
import jax.numpy as jnp
from jax.experimental import pallas as pl
from jax.experimental.pallas import tpu as pltpu

EPS = 1e-5


# --------------------------------------------------------------------------- #
# In-kernel helpers                                                            #
# --------------------------------------------------------------------------- #
def _shift_rows(a, d, H):
    """Row-folded (R=N*H, L) array -> same shape with row r holding row r+d of
    the SAME image (zeros where h+d falls outside [0, H))."""
    rolled = jnp.roll(a, -d, axis=0)                      # rolled[r] = a[r + d]
    h = jax.lax.broadcasted_iota(jnp.int32, a.shape, 0) % H
    keep = (h < H - d) if d > 0 else (h >= -d)
    return jnp.where(keep, rolled, 0.0)


def _dh_taps(a, H):
    """Concatenate the three dh-shifted copies (dh = 0,1,2 i.e. rows h-1,h,h+1)
    along lanes and cast once to bf16 for the MXU: (R, L) -> (R, 3*L) bf16."""
    return jnp.concatenate(
        [_shift_rows(a, -1, H), a, _shift_rows(a, 1, H)], axis=1
    ).astype(jnp.bfloat16)


def _bn_train(y, gamma_wc, beta_wc, W):
    """Training-mode BatchNorm2d on the row-folded layout, fused to one FMA.

    y: (R, W*C) f32 conv output, lanes ordered (w, c).
    gamma_wc/beta_wc: (1, W*C) f32, the per-channel affine pre-tiled over w.
    Per-channel sums are obtained by a sublane reduce followed by a log2(W)
    lane-roll butterfly (period of the wrap is W*C, so lane (w,c) ends up with
    the total over all w for its channel, already broadcast back over w).
    """
    R, L = y.shape
    C = L // W
    inv_m = 1.0 / (R * W)

    s = jnp.sum(y, axis=0, keepdims=True)                 # (1, W*C)
    ss = jnp.sum(y * y, axis=0, keepdims=True)            # (1, W*C)
    sh = C
    while sh < L:                                         # unrolled at trace time
        s = s + pltpu.roll(s, sh, 1)
        ss = ss + pltpu.roll(ss, sh, 1)
        sh *= 2

    mean = s * inv_m
    var = jnp.maximum(ss * inv_m - mean * mean, 0.0)      # biased batch variance
    scale = gamma_wc * jax.lax.rsqrt(var + EPS)
    shift = beta_wc - mean * scale
    return y * scale + shift


def basic_block_kernel(x_ref,
                       b1_ref, bs_ref, b2_ref,
                       g1_ref, be1_ref, gs_ref, bes_ref, g2_ref, be2_ref,
                       out_ref, *, H, W):
    # x_ref: (N*H, W*Cin) f32, row-folded NHWC.
    x = x_ref[...]

    # Shared LHS for conv1 AND the shortcut conv (one tap build, two matmuls).
    taps_x = _dh_taps(x, H)                               # (R, 3*W*Cin) bf16

    # Main conv1 and shortcut conv: single MXU matmuls against banded weights.
    y1 = jnp.dot(taps_x, b1_ref[...], preferred_element_type=jnp.float32)
    ys = jnp.dot(taps_x, bs_ref[...], preferred_element_type=jnp.float32)

    # Shortcut BN right here, before any conv2 staging, so taps_x is dead
    # before the (larger) conv2 LHS is materialized.
    ys = _bn_train(ys, gs_ref[...], bes_ref[...], W)      # (R, W*Cout) f32

    # Main branch: BN -> ReLU -> conv2 -> BN.
    y1 = jnp.maximum(_bn_train(y1, g1_ref[...], be1_ref[...], W), 0.0)
    taps_1 = _dh_taps(y1, H)                              # (R, 3*W*Cmid) bf16
    y2 = jnp.dot(taps_1, b2_ref[...], preferred_element_type=jnp.float32)
    y2 = _bn_train(y2, g2_ref[...], be2_ref[...], W)      # (R, W*Cout) f32

    # Residual add + final ReLU; lane-dense (R, W*Cout) store.
    out_ref[...] = jnp.maximum(y2 + ys, 0.0)


# --------------------------------------------------------------------------- #
# Wrapper-side parameter preparation                                           #
# --------------------------------------------------------------------------- #
def _banded_conv_weight(w_oihw, W):
    """(Cout, Cin, 3, 3) PyTorch conv weight -> (3*W*Cin, W*Cout) bf16 banded
    matmul weight for the row-folded layout.

    Row index   = dh*W*Cin + w_in*Cin + cin   (matches _dh_taps lane order)
    Column index= w_out*Cout + cout           (matches the folded output layout)
    The band encodes the dw shift; pixels that would read the zero pad simply
    have no band entry.
    """
    w = np.asarray(jax.device_get(w_oihw), dtype=np.float32)
    Co, Ci, _, _ = w.shape
    B = np.zeros((3 * W * Ci, W * Co), np.float32)
    for dh in range(3):
        for dw in range(3):
            blk = w[:, :, dh, dw].T                        # (Ci, Co)
            for wo in range(W):
                wi = wo + dw - 1
                if 0 <= wi < W:
                    r0 = dh * W * Ci + wi * Ci
                    c0 = wo * Co
                    B[r0:r0 + Ci, c0:c0 + Co] = blk
    return jnp.asarray(B, dtype=jnp.bfloat16)


def _tile_wc(v, W):
    """(C,) per-channel vector -> (1, W*C) matching the folded lane order."""
    return jnp.tile(v.reshape(1, -1), (1, W)).astype(jnp.float32)


def make_params(key, in_channels, out_channels, W, mid_channels=None):
    """Returns (kernel-ready operands, raw PyTorch-layout params, mid_channels).

    The banded weights and tiled gamma/beta are specific to the spatial width W
    (fixed-resolution block), mirroring 'pre-flatten the weights in the wrapper'.
    Conv biases are intentionally omitted: they cancel exactly under
    training-mode BatchNorm.
    """
    if not mid_channels:
        mid_channels = out_channels
    ks = jax.random.split(key, 9)

    def conv_w(k, cin, cout):
        return 0.1 * jax.random.normal(k, (cout, cin, 3, 3), jnp.float32)

    def vec(k, c, scale=0.1, offset=0.0):
        return offset + scale * jax.random.normal(k, (c,), jnp.float32)

    raw = dict(
        w1=conv_w(ks[0], in_channels, mid_channels),
        g1=vec(ks[1], mid_channels, offset=1.0), b1=vec(ks[2], mid_channels),
        w2=conv_w(ks[3], mid_channels, out_channels),
        g2=vec(ks[4], out_channels, offset=1.0), b2=vec(ks[5], out_channels),
        ws=conv_w(ks[6], in_channels, out_channels),
        gs=vec(ks[7], out_channels, offset=1.0), bs=vec(ks[8], out_channels),
    )
    ops = dict(
        b1=_banded_conv_weight(raw["w1"], W),
        bs=_banded_conv_weight(raw["ws"], W),
        b2=_banded_conv_weight(raw["w2"], W),
        g1=_tile_wc(raw["g1"], W), be1=_tile_wc(raw["b1"], W),
        gs=_tile_wc(raw["gs"], W), bes=_tile_wc(raw["bs"], W),
        g2=_tile_wc(raw["g2"], W), be2=_tile_wc(raw["b2"], W),
    )
    return ops, raw, mid_channels


def basic_block_forward(x_nchw, ops, mid_channels):
    N, Cin, H, W = x_nchw.shape
    Cout = ops["b2"].shape[1] // W
    assert W > 0 and (W & (W - 1)) == 0, "lane-roll BN butterfly needs W = 2^k"

    # Model-boundary layout plumbing only: NCHW -> row-folded (N*H, W*Cin).
    x2d = (jnp.transpose(x_nchw, (0, 2, 3, 1))
           .reshape(N * H, W * Cin)
           .astype(jnp.float32))

    kernel = functools.partial(basic_block_kernel, H=H, W=W)
    vmem = pl.BlockSpec(memory_space=pltpu.MemorySpace.VMEM)

    flops = 2 * (N * H) * (ops["b1"].shape[0] * ops["b1"].shape[1]
                           + ops["bs"].shape[0] * ops["bs"].shape[1]
                           + ops["b2"].shape[0] * ops["b2"].shape[1])
    bytes_accessed = (x2d.size * 4 + (N * H) * W * Cout * 4
                      + sum(int(ops[k].size) * 2 for k in ("b1", "bs", "b2"))
                      + sum(int(ops[k].size) * 4
                            for k in ("g1", "be1", "gs", "bes", "g2", "be2")))

    out2d = pl.pallas_call(
        kernel,
        out_shape=jax.ShapeDtypeStruct((N * H, W * Cout), jnp.float32),
        in_specs=[vmem] * 10,
        out_specs=vmem,
        cost_estimate=pl.CostEstimate(
            flops=int(flops),
            transcendentals=int(3 * W * Cout),
            bytes_accessed=int(bytes_accessed)),
    )(x2d,
      ops["b1"], ops["bs"], ops["b2"],
      ops["g1"], ops["be1"], ops["gs"], ops["bes"], ops["g2"], ops["be2"])

    # Folded (N*H, W*Cout) -> NCHW at the model boundary.
    return jnp.transpose(out2d.reshape(N, H, W, Cout), (0, 3, 1, 2))


# --------------------------------------------------------------------------- #
# Pure-JAX reference (f32) for a correctness sanity check                      #
# --------------------------------------------------------------------------- #
def _reference_forward(x_nchw, raw):
    x = jnp.transpose(x_nchw, (0, 2, 3, 1)).astype(jnp.float32)   # NHWC

    def conv(y, w_oihw):
        w_hwio = jnp.transpose(w_oihw, (2, 3, 1, 0))
        return jax.lax.conv_general_dilated(
            y, w_hwio, (1, 1), "SAME",
            dimension_numbers=("NHWC", "HWIO", "NHWC"))

    def bn(y, g, b):
        m = jnp.mean(y, axis=(0, 1, 2), keepdims=True)
        v = jnp.var(y, axis=(0, 1, 2), keepdims=True)             # biased
        return (y - m) * jax.lax.rsqrt(v + EPS) * g + b

    y1 = jnp.maximum(bn(conv(x, raw["w1"]), raw["g1"], raw["b1"]), 0.0)
    y2 = bn(conv(y1, raw["w2"]), raw["g2"], raw["b2"])
    ys = bn(conv(x, raw["ws"]), raw["gs"], raw["bs"])
    out = jnp.maximum(y2 + ys, 0.0)
    return jnp.transpose(out, (0, 3, 1, 2))                       # NCHW


if __name__ == "__main__":
    key = jax.random.PRNGKey(0)
    k_x, k_p = jax.random.split(key)

    N, Cin, Cout, H, W = 2, 4, 8, 16, 16
    x = jax.random.normal(k_x, (N, Cin, H, W), jnp.float32)

    ops, raw, cmid = make_params(k_p, Cin, Cout, W)

    out = basic_block_forward(x, ops, cmid)
    out = jax.block_until_ready(out)

    assert out.shape == (N, Cout, H, W), out.shape
    assert bool(jnp.all(out >= 0.0))          # final ReLU
    assert bool(jnp.all(jnp.isfinite(out)))

    # Correctness vs. an f32 lax.conv reference (tolerance covers bf16 MXU ops).
    ref = _reference_forward(x, raw)
    max_err = float(jnp.max(jnp.abs(out - ref)))
    assert max_err < 0.1, f"max abs err vs reference: {max_err}"

    print("KERNEL_OK")
</pallas_src>

<mosaic_0001>
module attributes {stable_mosaic.version = 11 : i64} {
  func.func @basic_block_kernel(%arg0: memref<32x64xf32, #tpu.memory_space<vmem>>, %arg1: memref<192x128xbf16, #tpu.memory_space<vmem>>, %arg2: memref<192x128xbf16, #tpu.memory_space<vmem>>, %arg3: memref<384x128xbf16, #tpu.memory_space<vmem>>, %arg4: memref<1x128xf32, #tpu.memory_space<vmem>>, %arg5: memref<1x128xf32, #tpu.memory_space<vmem>>, %arg6: memref<1x128xf32, #tpu.memory_space<vmem>>, %arg7: memref<1x128xf32, #tpu.memory_space<vmem>>, %arg8: memref<1x128xf32, #tpu.memory_space<vmem>>, %arg9: memref<1x128xf32, #tpu.memory_space<vmem>>, %arg10: memref<32x128xf32, #tpu.memory_space<vmem>>) attributes {dimension_semantics = [], scalar_prefetch = 0 : i64, scratch_operands = 0 : i64, tpu.core_type = #tpu.core_type<tc>} {
    %c0 = arith.constant 0 : index
    %c0_0 = arith.constant 0 : index
    %0 = vector.load %arg0[%c0, %c0_0] : memref<32x64xf32, #tpu.memory_space<vmem>>, vector<32x64xf32>
    %1 = vector.extract_strided_slice %0 {offsets = [31, 0], sizes = [1, 64], strides = [1, 1]} : vector<32x64xf32> to vector<1x64xf32>
    %2 = vector.extract_strided_slice %0 {offsets = [0, 0], sizes = [31, 64], strides = [1, 1]} : vector<32x64xf32> to vector<31x64xf32>
    %3 = tpu.concatenate %1, %2 in 0 : vector<1x64xf32>, vector<31x64xf32> -> vector<32x64xf32>
    %4 = tpu.iota {dimensions = array<i32: 0>} : vector<32x64xi32>
    %c16_i32 = arith.constant 16 : i32
    %c0_i32 = arith.constant 0 : i32
    %5 = arith.cmpi eq, %c16_i32, %c0_i32 : i32
    %c1_i32 = arith.constant 1 : i32
    %6 = arith.select %5, %c1_i32, %c16_i32 : i32
    %7 = vector.broadcast %6 : i32 to vector<32x64xi32>
    %8 = arith.remsi %4, %7 : vector<32x64xi32>
    %c0_i32_1 = arith.constant 0 : i32
    %9 = vector.broadcast %c0_i32_1 : i32 to vector<32x64xi32>
    %10 = arith.cmpi ne, %8, %9 : vector<32x64xi32>
    %c0_i32_2 = arith.constant 0 : i32
    %11 = vector.broadcast %c0_i32_2 : i32 to vector<32x64xi32>
    %12 = arith.cmpi slt, %8, %11 : vector<32x64xi32>
    %c0_i32_3 = arith.constant 0 : i32
    %13 = arith.cmpi slt, %6, %c0_i32_3 : i32
    %14 = vector.broadcast %13 : i1 to vector<32x64xi1>
    %15 = vector.broadcast %14 : vector<32x64xi1> to vector<32x64xi1>
    %16 = arith.xori %12, %15 : vector<32x64xi1>
    %17 = arith.andi %16, %10 : vector<32x64xi1>
    %18 = vector.broadcast %6 : i32 to vector<32x64xi32>
    %19 = arith.addi %8, %18 : vector<32x64xi32>
    %20 = arith.select %17, %19, %8 : vector<32x64xi1>, vector<32x64xi32>
    %c1_i32_4 = arith.constant 1 : i32
    %21 = vector.broadcast %c1_i32_4 : i32 to vector<32x64xi32>
    %22 = arith.cmpi sge, %20, %21 : vector<32x64xi32>
    %cst = arith.constant 0.000000e+00 : f32
    %23 = vector.broadcast %cst : f32 to vector<32x64xf32>
    %24 = arith.select %22, %3, %23 : vector<32x64xi1>, vector<32x64xf32>
    %25 = vector.extract_strided_slice %0 {offsets = [1, 0], sizes = [31, 64], strides = [1, 1]} : vector<32x64xf32> to vector<31x64xf32>
    %26 = vector.extract_strided_slice %0 {offsets = [0, 0], sizes = [1, 64], strides = [1, 1]} : vector<32x64xf32> to vector<1x64xf32>
    %27 = tpu.concatenate %25, %26 in 0 : vector<31x64xf32>, vector<1x64xf32> -> vector<32x64xf32>
    %28 = tpu.iota {dimensions = array<i32: 0>} : vector<32x64xi32>
    %c16_i32_5 = arith.constant 16 : i32
    %c0_i32_6 = arith.constant 0 : i32
    %29 = arith.cmpi eq, %c16_i32_5, %c0_i32_6 : i32
    %c1_i32_7 = arith.constant 1 : i32
    %30 = arith.select %29, %c1_i32_7, %c16_i32_5 : i32
    %31 = vector.broadcast %30 : i32 to vector<32x64xi32>
    %32 = arith.remsi %28, %31 : vector<32x64xi32>
    %c0_i32_8 = arith.constant 0 : i32
    %33 = vector.broadcast %c0_i32_8 : i32 to vector<32x64xi32>
    %34 = arith.cmpi ne, %32, %33 : vector<32x64xi32>
    %c0_i32_9 = arith.constant 0 : i32
    %35 = vector.broadcast %c0_i32_9 : i32 to vector<32x64xi32>
    %36 = arith.cmpi slt, %32, %35 : vector<32x64xi32>
    %c0_i32_10 = arith.constant 0 : i32
    %37 = arith.cmpi slt, %30, %c0_i32_10 : i32
    %38 = vector.broadcast %37 : i1 to vector<32x64xi1>
    %39 = vector.broadcast %38 : vector<32x64xi1> to vector<32x64xi1>
    %40 = arith.xori %36, %39 : vector<32x64xi1>
    %41 = arith.andi %40, %34 : vector<32x64xi1>
    %42 = vector.broadcast %30 : i32 to vector<32x64xi32>
    %43 = arith.addi %32, %42 : vector<32x64xi32>
    %44 = arith.select %41, %43, %32 : vector<32x64xi1>, vector<32x64xi32>
    %c15_i32 = arith.constant 15 : i32
    %45 = vector.broadcast %c15_i32 : i32 to vector<32x64xi32>
    %46 = arith.cmpi slt, %44, %45 : vector<32x64xi32>
    %cst_11 = arith.constant 0.000000e+00 : f32
    %47 = vector.broadcast %cst_11 : f32 to vector<32x64xf32>
    %48 = arith.select %46, %27, %47 : vector<32x64xi1>, vector<32x64xf32>
    %49 = tpu.concatenate %24, %0, %48 in 1 : vector<32x64xf32>, vector<32x64xf32>, vector<32x64xf32> -> vector<32x192xf32>
    %50 = arith.truncf %49 : vector<32x192xf32> to vector<32x192xbf16>
    %c0_12 = arith.constant 0 : index
    %c0_13 = arith.constant 0 : index
    %51 = vector.load %arg1[%c0_12, %c0_13] : memref<192x128xbf16, #tpu.memory_space<vmem>>, vector<192x128xbf16>
    %cst_14 = arith.constant dense<0.000000e+00> : vector<32x128xf32>
    %52 = tpu.matmul %50, %51, %cst_14 {dimension_numbers = #tpu.dot_dimension_numbers<[1], [0], [0], [1], [0, 0, 1, 1], [], []>} : vector<32x192xbf16>, vector<192x128xbf16>, vector<32x128xf32> -> vector<32x128xf32>
    %c0_15 = arith.constant 0 : index
    %c0_16 = arith.constant 0 : index
    %53 = vector.load %arg2[%c0_15, %c0_16] : memref<192x128xbf16, #tpu.memory_space<vmem>>, vector<192x128xbf16>
    %cst_17 = arith.constant dense<0.000000e+00> : vector<32x128xf32>
    %54 = tpu.matmul %50, %53, %cst_17 {dimension_numbers = #tpu.dot_dimension_numbers<[1], [0], [0], [1], [0, 0, 1, 1], [], []>} : vector<32x192xbf16>, vector<192x128xbf16>, vector<32x128xf32> -> vector<32x128xf32>
    %c0_18 = arith.constant 0 : index
    %c0_19 = arith.constant 0 : index
    %55 = vector.load %arg6[%c0_18, %c0_19] : memref<1x128xf32, #tpu.memory_space<vmem>>, vector<1x128xf32>
    %c0_20 = arith.constant 0 : index
    %c0_21 = arith.constant 0 : index
    %56 = vector.load %arg7[%c0_20, %c0_21] : memref<1x128xf32, #tpu.memory_space<vmem>>, vector<1x128xf32>
    %cst_22 = arith.constant dense<0.000000e+00> : vector<128xf32>
    %57 = vector.multi_reduction <add>, %54, %cst_22 [0] : vector<32x128xf32> to vector<128xf32>
    %58 = vector.shape_cast %57 : vector<128xf32> to vector<1x128xf32>
    %59 = arith.mulf %54, %54 : vector<32x128xf32>
    %cst_23 = arith.constant dense<0.000000e+00> : vector<128xf32>
    %60 = vector.multi_reduction <add>, %59, %cst_23 [0] : vector<32x128xf32> to vector<128xf32>
    %61 = vector.shape_cast %60 : vector<128xf32> to vector<1x128xf32>
    %c8_i32 = arith.constant 8 : i32
    %62 = tpu.dynamic_rotate %58 by %c8_i32 dim 1 : vector<1x128xf32>, i32 -> vector<1x128xf32>
    %63 = arith.addf %58, %62 : vector<1x128xf32>
    %c8_i32_24 = arith.constant 8 : i32
    %64 = tpu.dynamic_rotate %61 by %c8_i32_24 dim 1 : vector<1x128xf32>, i32 -> vector<1x128xf32>
    %65 = arith.addf %61, %64 : vector<1x128xf32>
    %c16_i32_25 = arith.constant 16 : i32
    %66 = tpu.dynamic_rotate %63 by %c16_i32_25 dim 1 : vector<1x128xf32>, i32 -> vector<1x128xf32>
    %67 = arith.addf %63, %66 : vector<1x128xf32>
    %c16_i32_26 = arith.constant 16 : i32
    %68 = tpu.dynamic_rotate %65 by %c16_i32_26 dim 1 : vector<1x128xf32>, i32 -> vector<1x128xf32>
    %69 = arith.addf %65, %68 : vector<1x128xf32>
    %c32_i32 = arith.constant 32 : i32
    %70 = tpu.dynamic_rotate %67 by %c32_i32 dim 1 : vector<1x128xf32>, i32 -> vector<1x128xf32>
    %71 = arith.addf %67, %70 : vector<1x128xf32>
    %c32_i32_27 = arith.constant 32 : i32
    %72 = tpu.dynamic_rotate %69 by %c32_i32_27 dim 1 : vector<1x128xf32>, i32 -> vector<1x128xf32>
    %73 = arith.addf %69, %72 : vector<1x128xf32>
    %c64_i32 = arith.constant 64 : i32
    %74 = tpu.dynamic_rotate %71 by %c64_i32 dim 1 : vector<1x128xf32>, i32 -> vector<1x128xf32>
    %75 = arith.addf %71, %74 : vector<1x128xf32>
    %c64_i32_28 = arith.constant 64 : i32
    %76 = tpu.dynamic_rotate %73 by %c64_i32_28 dim 1 : vector<1x128xf32>, i32 -> vector<1x128xf32>
    %77 = arith.addf %73, %76 : vector<1x128xf32>
    %cst_29 = arith.constant 0.001953125 : f32
    %78 = vector.broadcast %cst_29 : f32 to vector<1x128xf32>
    %79 = arith.mulf %75, %78 : vector<1x128xf32>
    %cst_30 = arith.constant 0.001953125 : f32
    %80 = vector.broadcast %cst_30 : f32 to vector<1x128xf32>
    %81 = arith.mulf %77, %80 : vector<1x128xf32>
    %82 = arith.mulf %79, %79 : vector<1x128xf32>
    %83 = arith.subf %81, %82 : vector<1x128xf32>
    %cst_31 = arith.constant 0.000000e+00 : f32
    %84 = vector.broadcast %cst_31 : f32 to vector<1x128xf32>
    %85 = arith.maximumf %83, %84 : vector<1x128xf32>
    %cst_32 = arith.constant 9.99999974E-6 : f32
    %86 = vector.broadcast %cst_32 : f32 to vector<1x128xf32>
    %87 = arith.addf %85, %86 : vector<1x128xf32>
    %88 = math.rsqrt %87 : vector<1x128xf32>
    %89 = arith.mulf %55, %88 : vector<1x128xf32>
    %90 = arith.mulf %79, %89 : vector<1x128xf32>
    %91 = arith.subf %56, %90 : vector<1x128xf32>
    %92 = vector.broadcast %89 : vector<1x128xf32> to vector<32x128xf32>
    %93 = arith.mulf %54, %92 : vector<32x128xf32>
    %94 = vector.broadcast %91 : vector<1x128xf32> to vector<32x128xf32>
    %95 = arith.addf %93, %94 : vector<32x128xf32>
    %c0_33 = arith.constant 0 : index
    %c0_34 = arith.constant 0 : index
    %96 = vector.load %arg4[%c0_33, %c0_34] : memref<1x128xf32, #tpu.memory_space<vmem>>, vector<1x128xf32>
    %c0_35 = arith.constant 0 : index
    %c0_36 = arith.constant 0 : index
    %97 = vector.load %arg5[%c0_35, %c0_36] : memref<1x128xf32, #tpu.memory_space<vmem>>, vector<1x128xf32>
    %cst_37 = arith.constant dense<0.000000e+00> : vector<128xf32>
    %98 = vector.multi_reduction <add>, %52, %cst_37 [0] : vector<32x128xf32> to vector<128xf32>
    %99 = vector.shape_cast %98 : vector<128xf32> to vector<1x128xf32>
    %100 = arith.mulf %52, %52 : vector<32x128xf32>
    %cst_38 = arith.constant dense<0.000000e+00> : vector<128xf32>
    %101 = vector.multi_reduction <add>, %100, %cst_38 [0] : vector<32x128xf32> to vector<128xf32>
    %102 = vector.shape_cast %101 : vector<128xf32> to vector<1x128xf32>
    %c8_i32_39 = arith.constant 8 : i32
    %103 = tpu.dynamic_rotate %99 by %c8_i32_39 dim 1 : vector<1x128xf32>, i32 -> vector<1x128xf32>
    %104 = arith.addf %99, %103 : vector<1x128xf32>
    %c8_i32_40 = arith.constant 8 : i32
    %105 = tpu.dynamic_rotate %102 by %c8_i32_40 dim 1 : vector<1x128xf32>, i32 -> vector<1x128xf32>
    %106 = arith.addf %102, %105 : vector<1x128xf32>
    %c16_i32_41 = arith.constant 16 : i32
    %107 = tpu.dynamic_rotate %104 by %c16_i32_41 dim 1 : vector<1x128xf32>, i32 -> vector<1x128xf32>
    %108 = arith.addf %104, %107 : vector<1x128xf32>
    %c16_i32_42 = arith.constant 16 : i32
    %109 = tpu.dynamic_rotate %106 by %c16_i32_42 dim 1 : vector<1x128xf32>, i32 -> vector<1x128xf32>
    %110 = arith.addf %106, %109 : vector<1x128xf32>
    %c32_i32_43 = arith.constant 32 : i32
    %111 = tpu.dynamic_rotate %108 by %c32_i32_43 dim 1 : vector<1x128xf32>, i32 -> vector<1x128xf32>
    %112 = arith.addf %108, %111 : vector<1x128xf32>
    %c32_i32_44 = arith.constant 32 : i32
    %113 = tpu.dynamic_rotate %110 by %c32_i32_44 dim 1 : vector<1x128xf32>, i32 -> vector<1x128xf32>
    %114 = arith.addf %110, %113 : vector<1x128xf32>
    %c64_i32_45 = arith.constant 64 : i32
    %115 = tpu.dynamic_rotate %112 by %c64_i32_45 dim 1 : vector<1x128xf32>, i32 -> vector<1x128xf32>
    %116 = arith.addf %112, %115 : vector<1x128xf32>
    %c64_i32_46 = arith.constant 64 : i32
    %117 = tpu.dynamic_rotate %114 by %c64_i32_46 dim 1 : vector<1x128xf32>, i32 -> vector<1x128xf32>
    %118 = arith.addf %114, %117 : vector<1x128xf32>
    %cst_47 = arith.constant 0.001953125 : f32
    %119 = vector.broadcast %cst_47 : f32 to vector<1x128xf32>
    %120 = arith.mulf %116, %119 : vector<1x128xf32>
    %cst_48 = arith.constant 0.001953125 : f32
    %121 = vector.broadcast %cst_48 : f32 to vector<1x128xf32>
    %122 = arith.mulf %118, %121 : vector<1x128xf32>
    %123 = arith.mulf %120, %120 : vector<1x128xf32>
    %124 = arith.subf %122, %123 : vector<1x128xf32>
    %cst_49 = arith.constant 0.000000e+00 : f32
    %125 = vector.broadcast %cst_49 : f32 to vector<1x128xf32>
    %126 = arith.maximumf %124, %125 : vector<1x128xf32>
    %cst_50 = arith.constant 9.99999974E-6 : f32
    %127 = vector.broadcast %cst_50 : f32 to vector<1x128xf32>
    %128 = arith.addf %126, %127 : vector<1x128xf32>
    %129 = math.rsqrt %128 : vector<1x128xf32>
    %130 = arith.mulf %96, %129 : vector<1x128xf32>
    %131 = arith.mulf %120, %130 : vector<1x128xf32>
    %132 = arith.subf %97, %131 : vector<1x128xf32>
    %133 = vector.broadcast %130 : vector<1x128xf32> to vector<32x128xf32>
    %134 = arith.mulf %52, %133 : vector<32x128xf32>
    %135 = vector.broadcast %132 : vector<1x128xf32> to vector<32x128xf32>
    %136 = arith.addf %134, %135 : vector<32x128xf32>
    %cst_51 = arith.constant 0.000000e+00 : f32
    %137 = vector.broadcast %cst_51 : f32 to vector<32x128xf32>
    %138 = arith.maximumf %136, %137 : vector<32x128xf32>
    %139 = vector.extract_strided_slice %138 {offsets = [31, 0], sizes = [1, 128], strides = [1, 1]} : vector<32x128xf32> to vector<1x128xf32>
    %140 = vector.extract_strided_slice %138 {offsets = [0, 0], sizes = [31, 128], strides = [1, 1]} : vector<32x128xf32> to vector<31x128xf32>
    %141 = tpu.concatenate %139, %140 in 0 : vector<1x128xf32>, vector<31x128xf32> -> vector<32x128xf32>
    %142 = tpu.iota {dimensions = array<i32: 0>} : vector<32x128xi32>
    %c16_i32_52 = arith.constant 16 : i32
    %c0_i32_53 = arith.constant 0 : i32
    %143 = arith.cmpi eq, %c16_i32_52, %c0_i32_53 : i32
    %c1_i32_54 = arith.constant 1 : i32
    %144 = arith.select %143, %c1_i32_54, %c16_i32_52 : i32
    %145 = vector.broadcast %144 : i32 to vector<32x128xi32>
    %146 = arith.remsi %142, %145 : vector<32x128xi32>
    %c0_i32_55 = arith.constant 0 : i32
    %147 = vector.broadcast %c0_i32_55 : i32 to vector<32x128xi32>
    %148 = arith.cmpi ne, %146, %147 : vector<32x128xi32>
    %c0_i32_56 = arith.constant 0 : i32
    %149 = vector.broadcast %c0_i32_56 : i32 to vector<32x128xi32>
    %150 = arith.cmpi slt, %146, %149 : vector<32x128xi32>
    %c0_i32_57 = arith.constant 0 : i32
    %151 = arith.cmpi slt, %144, %c0_i32_57 : i32
    %152 = vector.broadcast %151 : i1 to vector<32x128xi1>
    %153 = vector.broadcast %152 : vector<32x128xi1> to vector<32x128xi1>
    %154 = arith.xori %150, %153 : vector<32x128xi1>
    %155 = arith.andi %154, %148 : vector<32x128xi1>
    %156 = vector.broadcast %144 : i32 to vector<32x128xi32>
    %157 = arith.addi %146, %156 : vector<32x128xi32>
    %158 = arith.select %155, %157, %146 : vector<32x128xi1>, vector<32x128xi32>
    %c1_i32_58 = arith.constant 1 : i32
    %159 = vector.broadcast %c1_i32_58 : i32 to vector<32x128xi32>
    %160 = arith.cmpi sge, %158, %159 : vector<32x128xi32>
    %cst_59 = arith.constant 0.000000e+00 : f32
    %161 = vector.broadcast %cst_59 : f32 to vector<32x128xf32>
    %162 = arith.select %160, %141, %161 : vector<32x128xi1>, vector<32x128xf32>
    %163 = vector.extract_strided_slice %138 {offsets = [1, 0], sizes = [31, 128], strides = [1, 1]} : vector<32x128xf32> to vector<31x128xf32>
    %164 = vector.extract_strided_slice %138 {offsets = [0, 0], sizes = [1, 128], strides = [1, 1]} : vector<32x128xf32> to vector<1x128xf32>
    %165 = tpu.concatenate %163, %164 in 0 : vector<31x128xf32>, vector<1x128xf32> -> vector<32x128xf32>
    %166 = tpu.iota {dimensions = array<i32: 0>} : vector<32x128xi32>
    %c16_i32_60 = arith.constant 16 : i32
    %c0_i32_61 = arith.constant 0 : i32
    %167 = arith.cmpi eq, %c16_i32_60, %c0_i32_61 : i32
    %c1_i32_62 = arith.constant 1 : i32
    %168 = arith.select %167, %c1_i32_62, %c16_i32_60 : i32
    %169 = vector.broadcast %168 : i32 to vector<32x128xi32>
    %170 = arith.remsi %166, %169 : vector<32x128xi32>
    %c0_i32_63 = arith.constant 0 : i32
    %171 = vector.broadcast %c0_i32_63 : i32 to vector<32x128xi32>
    %172 = arith.cmpi ne, %170, %171 : vector<32x128xi32>
    %c0_i32_64 = arith.constant 0 : i32
    %173 = vector.broadcast %c0_i32_64 : i32 to vector<32x128xi32>
    %174 = arith.cmpi slt, %170, %173 : vector<32x128xi32>
    %c0_i32_65 = arith.constant 0 : i32
    %175 = arith.cmpi slt, %168, %c0_i32_65 : i32
    %176 = vector.broadcast %175 : i1 to vector<32x128xi1>
    %177 = vector.broadcast %176 : vector<32x128xi1> to vector<32x128xi1>
    %178 = arith.xori %174, %177 : vector<32x128xi1>
    %179 = arith.andi %178, %172 : vector<32x128xi1>
    %180 = vector.broadcast %168 : i32 to vector<32x128xi32>
    %181 = arith.addi %170, %180 : vector<32x128xi32>
    %182 = arith.select %179, %181, %170 : vector<32x128xi1>, vector<32x128xi32>
    %c15_i32_66 = arith.constant 15 : i32
    %183 = vector.broadcast %c15_i32_66 : i32 to vector<32x128xi32>
    %184 = arith.cmpi slt, %182, %183 : vector<32x128xi32>
    %cst_67 = arith.constant 0.000000e+00 : f32
    %185 = vector.broadcast %cst_67 : f32 to vector<32x128xf32>
    %186 = arith.select %184, %165, %185 : vector<32x128xi1>, vector<32x128xf32>
    %187 = tpu.concatenate %162, %138, %186 in 1 : vector<32x128xf32>, vector<32x128xf32>, vector<32x128xf32> -> vector<32x384xf32>
    %188 = arith.truncf %187 : vector<32x384xf32> to vector<32x384xbf16>
    %c0_68 = arith.constant 0 : index
    %c0_69 = arith.constant 0 : index
    %189 = vector.load %arg3[%c0_68, %c0_69] : memref<384x128xbf16, #tpu.memory_space<vmem>>, vector<384x128xbf16>
    %cst_70 = arith.constant dense<0.000000e+00> : vector<32x128xf32>
    %190 = tpu.matmul %188, %189, %cst_70 {dimension_numbers = #tpu.dot_dimension_numbers<[1], [0], [0], [1], [0, 0, 1, 1], [], []>} : vector<32x384xbf16>, vector<384x128xbf16>, vector<32x128xf32> -> vector<32x128xf32>
    %c0_71 = arith.constant 0 : index
    %c0_72 = arith.constant 0 : index
    %191 = vector.load %arg8[%c0_71, %c0_72] : memref<1x128xf32, #tpu.memory_space<vmem>>, vector<1x128xf32>
    %c0_73 = arith.constant 0 : index
    %c0_74 = arith.constant 0 : index
    %192 = vector.load %arg9[%c0_73, %c0_74] : memref<1x128xf32, #tpu.memory_space<vmem>>, vector<1x128xf32>
    %cst_75 = arith.constant dense<0.000000e+00> : vector<128xf32>
    %193 = vector.multi_reduction <add>, %190, %cst_75 [0] : vector<32x128xf32> to vector<128xf32>
    %194 = vector.shape_cast %193 : vector<128xf32> to vector<1x128xf32>
    %195 = arith.mulf %190, %190 : vector<32x128xf32>
    %cst_76 = arith.constant dense<0.000000e+00> : vector<128xf32>
    %196 = vector.multi_reduction <add>, %195, %cst_76 [0] : vector<32x128xf32> to vector<128xf32>
    %197 = vector.shape_cast %196 : vector<128xf32> to vector<1x128xf32>
    %c8_i32_77 = arith.constant 8 : i32
    %198 = tpu.dynamic_rotate %194 by %c8_i32_77 dim 1 : vector<1x128xf32>, i32 -> vector<1x128xf32>
    %199 = arith.addf %194, %198 : vector<1x128xf32>
    %c8_i32_78 = arith.constant 8 : i32
    %200 = tpu.dynamic_rotate %197 by %c8_i32_78 dim 1 : vector<1x128xf32>, i32 -> vector<1x128xf32>
    %201 = arith.addf %197, %200 : vector<1x128xf32>
    %c16_i32_79 = arith.constant 16 : i32
    %202 = tpu.dynamic_rotate %199 by %c16_i32_79 dim 1 : vector<1x128xf32>, i32 -> vector<1x128xf32>
    %203 = arith.addf %199, %202 : vector<1x128xf32>
    %c16_i32_80 = arith.constant 16 : i32
    %204 = tpu.dynamic_rotate %201 by %c16_i32_80 dim 1 : vector<1x128xf32>, i32 -> vector<1x128xf32>
    %205 = arith.addf %201, %204 : vector<1x128xf32>
    %c32_i32_81 = arith.constant 32 : i32
    %206 = tpu.dynamic_rotate %203 by %c32_i32_81 dim 1 : vector<1x128xf32>, i32 -> vector<1x128xf32>
    %207 = arith.addf %203, %206 : vector<1x128xf32>
    %c32_i32_82 = arith.constant 32 : i32
    %208 = tpu.dynamic_rotate %205 by %c32_i32_82 dim 1 : vector<1x128xf32>, i32 -> vector<1x128xf32>
    %209 = arith.addf %205, %208 : vector<1x128xf32>
    %c64_i32_83 = arith.constant 64 : i32
    %210 = tpu.dynamic_rotate %207 by %c64_i32_83 dim 1 : vector<1x128xf32>, i32 -> vector<1x128xf32>
    %211 = arith.addf %207, %210 : vector<1x128xf32>
    %c64_i32_84 = arith.constant 64 : i32
    %212 = tpu.dynamic_rotate %209 by %c64_i32_84 dim 1 : vector<1x128xf32>, i32 -> vector<1x128xf32>
    %213 = arith.addf %209, %212 : vector<1x128xf32>
    %cst_85 = arith.constant 0.001953125 : f32
    %214 = vector.broadcast %cst_85 : f32 to vector<1x128xf32>
    %215 = arith.mulf %211, %214 : vector<1x128xf32>
    %cst_86 = arith.constant 0.001953125 : f32
    %216 = vector.broadcast %cst_86 : f32 to vector<1x128xf32>
    %217 = arith.mulf %213, %216 : vector<1x128xf32>
    %218 = arith.mulf %215, %215 : vector<1x128xf32>
    %219 = arith.subf %217, %218 : vector<1x128xf32>
    %cst_87 = arith.constant 0.000000e+00 : f32
    %220 = vector.broadcast %cst_87 : f32 to vector<1x128xf32>
    %221 = arith.maximumf %219, %220 : vector<1x128xf32>
    %cst_88 = arith.constant 9.99999974E-6 : f32
    %222 = vector.broadcast %cst_88 : f32 to vector<1x128xf32>
    %223 = arith.addf %221, %222 : vector<1x128xf32>
    %224 = math.rsqrt %223 : vector<1x128xf32>
    %225 = arith.mulf %191, %224 : vector<1x128xf32>
    %226 = arith.mulf %215, %225 : vector<1x128xf32>
    %227 = arith.subf %192, %226 : vector<1x128xf32>
    %228 = vector.broadcast %225 : vector<1x128xf32> to vector<32x128xf32>
    %229 = arith.mulf %190, %228 : vector<32x128xf32>
    %230 = vector.broadcast %227 : vector<1x128xf32> to vector<32x128xf32>
    %231 = arith.addf %229, %230 : vector<32x128xf32>
    %232 = arith.addf %231, %95 : vector<32x128xf32>
    %cst_89 = arith.constant 0.000000e+00 : f32
    %233 = vector.broadcast %cst_89 : f32 to vector<32x128xf32>
    %234 = arith.maximumf %232, %233 : vector<32x128xf32>
    %c0_90 = arith.constant 0 : index
    %c0_91 = arith.constant 0 : index
    %235 = vector.load %arg10[%c0_90, %c0_91] : memref<32x128xf32, #tpu.memory_space<vmem>>, vector<32x128xf32>
    tpu.vector_store %arg10[%c0_90, %c0_91], %234 {strides = array<i32>} : memref<32x128xf32, #tpu.memory_space<vmem>>, vector<32x128xf32>,
    return
  }
}

</mosaic_0001>

<llo_original>
// kernel: tpu_custom_call.1
$region0: #{tpu_custom_call.1}
  #allocation0 [shape = 'u32[]', space=smem, size = 0x4, offset = 0x4, fixed_abs, tag = 'smem constant byte address 0x4 - core index']
  #allocation1 [shape = 'u32[144,128]{1,0:T(1,128)}', space=vmem, size = 0x12000, scoped, tag = 'internal scratch']
  %s0 = inlined_call_operand.hbm [shape: f32[32,64], index: 0, kind: input, shape index: {}]
  %s1 = inlined_call_operand.hbm [shape: bf16[192,128], index: 1, kind: input, shape index: {}]
  %s2 = inlined_call_operand.hbm [shape: bf16[192,128], index: 2, kind: input, shape index: {}]
  %s3 = inlined_call_operand.hbm [shape: bf16[384,128], index: 3, kind: input, shape index: {}]
  %s4 = inlined_call_operand.vmem [shape: f32[1,128], index: 4, kind: input, shape index: {}]
  %s5 = inlined_call_operand.vmem [shape: f32[1,128], index: 5, kind: input, shape index: {}]
  %s6 = inlined_call_operand.vmem [shape: f32[1,128], index: 6, kind: input, shape index: {}]
  %s7 = inlined_call_operand.vmem [shape: f32[1,128], index: 7, kind: input, shape index: {}]
  %s8 = inlined_call_operand.vmem [shape: f32[1,128], index: 8, kind: input, shape index: {}]
  %s9 = inlined_call_operand.vmem [shape: f32[1,128], index: 9, kind: input, shape index: {}]
  %s10 = inlined_call_operand.hbm [shape: f32[32,128], index: 10, kind: output, shape index: {}]
  %s11 = sld [smem:[#allocation0]]
  $region66: #{tpu_custom_call.1} parent=0
    _
  %s13 = ssub.s32 1, %s11
  %s14 = scalar_select 0, %s13, %s11
  $region1: #{tpu_custom_call.1} parent=0
    #allocation2 [shape = 'u8[16384]{0}', space=vmem, size = 0x4000, scoped, tag = 'input window, operand 0, single buffered']
    #allocation3 [shape = 's32[1]{0}', space=sflag, size = 0x4, scoped, tag = 'scoped memory for tpu_custom_call.1']
    #allocation4 [shape = 's32[1]{0}', space=sflag, size = 0x4, scoped, tag = 'scoped memory for tpu_custom_call.1']
    #allocation5 [shape = 'u8[49152]{0}', space=vmem, size = 0xc000, scoped, tag = 'input window, operand 1, single buffered']
    #allocation6 [shape = 's32[1]{0}', space=sflag, size = 0x4, scoped, tag = 'scoped memory for tpu_custom_call.1']
    #allocation7 [shape = 'u8[49152]{0}', space=vmem, size = 0xc000, scoped, tag = 'input window, operand 2, single buffered']
    #allocation8 [shape = 'u8[98304]{0}', space=vmem, size = 0x18000, scoped, tag = 'input window, operand 3, single buffered']
    #allocation9 [shape = 's32[1]{0}', space=sflag, size = 0x4, scoped, tag = 'scoped memory for tpu_custom_call.1']
    #allocation10 [shape = 'u8[16384]{0}', space=vmem, size = 0x4000, scoped, tag = 'output window, operand 0, single buffered']
    %15 = vsyncpa [#allocation3], 0
    %16 = vsyncpa [#allocation6], 0
    %17 = vsyncpa [#allocation9], 0
    %18 = vsyncpa [#allocation4], 0
    // Predicated region
    $region2: #{tpu_custom_call.1} parent=1 // pred_check
      _
    $region3: #{tpu_custom_call.1} parent=1 // pred_check_branch
      %20 = sbr.rel (0) target = $region5
    $region4: #{tpu_custom_call.1} parent=1 // pred_region
      %s22 = ssub.s32 512, 512
      %23 = vsyncadd [#allocation3], %s22
      %s24 = sshll.u32 [#allocation2], 4
      %s25 = int_to_ptr.vmem [resolvable:$true] %s24
      %30 = dma.hbm_to_vmem [thread:$0]  %s0, 512, %s25, [#allocation3], 128, 128, 8
    $region5: #{tpu_custom_call.1} parent=1 // pred_fallthru
      _
    // Predicated region
    $region6: #{tpu_custom_call.1} parent=1 // pred_check
      _
    $region7: #{tpu_custom_call.1} parent=1 // pred_check_branch
      %32 = sbr.rel (0) target = $region9
    $region8: #{tpu_custom_call.1} parent=1 // pred_region
      %s34 = ssub.s32 1536, 1536
      %35 = vsyncadd [#allocation6], %s34
      %s36 = sshll.u32 [#allocation5], 4
      %s37 = int_to_ptr.vmem [resolvable:$true] %s36
      %42 = dma.hbm_to_vmem [thread:$0]  %s1, 1536, %s37, [#allocation6], 64, 64, 4
    $region9: #{tpu_custom_call.1} parent=1 // pred_fallthru
      _
    // Predicated region
    $region10: #{tpu_custom_call.1} parent=1 // pred_check
      _
    $region11: #{tpu_custom_call.1} parent=1 // pred_check_branch
      %44 = sbr.rel (0) target = $region13
    $region12: #{tpu_custom_call.1} parent=1 // pred_region
      %s46 = ssub.s32 1536, 1536
      %47 = vsyncadd [#allocation6], %s46
      %s48 = sshll.u32 [#allocation7], 4
      %s49 = int_to_ptr.vmem [resolvable:$true] %s48
      %54 = dma.hbm_to_vmem [thread:$0]  %s2, 1536, %s49, [#allocation6], 64, 64, 4
    $region13: #{tpu_custom_call.1} parent=1 // pred_fallthru
      _
    // Predicated region
    $region14: #{tpu_custom_call.1} parent=1 // pred_check
      _
    $region15: #{tpu_custom_call.1} parent=1 // pred_check_branch
      %56 = sbr.rel (0) target = $region17
    $region16: #{tpu_custom_call.1} parent=1 // pred_region
      %s58 = ssub.s32 3072, 3072
      %59 = vsyncadd [#allocation9], %s58
      %s60 = sshll.u32 [#allocation8], 4
      %s61 = int_to_ptr.vmem [resolvable:$true] %s60
      %66 = dma.hbm_to_vmem [thread:$0]  %s3, 3072, %s61, [#allocation9], 64, 64, 4
    $region17: #{tpu_custom_call.1} parent=1 // pred_fallthru
      _
    // Predicated region
    $region18: #{tpu_custom_call.1} parent=1 // pred_check
      _
    $region19: #{tpu_custom_call.1} parent=1 // pred_check_branch
      %68 = sbr.rel (0) target = $region21
    $region20: #{tpu_custom_call.1} parent=1 // pred_region
      _
    $region21: #{tpu_custom_call.1} parent=1 // pred_fallthru
      _
    // Predicated region
    $region22: #{tpu_custom_call.1} parent=1 // pred_check
      _
    $region23: #{tpu_custom_call.1} parent=1 // pred_check_branch
      %70 = sbr.rel (0) target = $region25
    $region24: #{tpu_custom_call.1} parent=1 // pred_region
      _
    $region25: #{tpu_custom_call.1} parent=1 // pred_fallthru
      _
    // Predicated region
    $region26: #{tpu_custom_call.1} parent=1 // pred_check
      _
    $region27: #{tpu_custom_call.1} parent=1 // pred_check_branch
      %72 = sbr.rel (0) target = $region29
    $region28: #{tpu_custom_call.1} parent=1 // pred_region
      _
    $region29: #{tpu_custom_call.1} parent=1 // pred_fallthru
      _
    // Predicated region
    $region30: #{tpu_custom_call.1} parent=1 // pred_check
      _
    $region31: #{tpu_custom_call.1} parent=1 // pred_check_branch
      %74 = sbr.rel (0) target = $region33
    $region32: #{tpu_custom_call.1} parent=1 // pred_region
      _
    $region33: #{tpu_custom_call.1} parent=1 // pred_fallthru
      _
    // Predicated region
    $region34: #{tpu_custom_call.1} parent=1 // pred_check
      _
    $region35: #{tpu_custom_call.1} parent=1 // pred_check_branch
      %76 = sbr.rel (0) target = $region37
    $region36: #{tpu_custom_call.1} parent=1 // pred_region
      _
    $region37: #{tpu_custom_call.1} parent=1 // pred_fallthru
      _
    // Predicated region
    $region38: #{tpu_custom_call.1} parent=1 // pred_check
      _
    $region39: #{tpu_custom_call.1} parent=1 // pred_check_branch
      %78 = sbr.rel (0) target = $region41
    $region40: #{tpu_custom_call.1} parent=1 // pred_region
      _
    $region41: #{tpu_custom_call.1} parent=1 // pred_fallthru
      _
    // Predicated region
    $region42: #{tpu_custom_call.1} parent=1 // pred_check
      _
    $region43: #{tpu_custom_call.1} parent=1 // pred_check_branch
      %80 = sbr.rel (0) target = $region45
    $region44: #{tpu_custom_call.1} parent=1 // pred_region
      %81 = dma.done [#allocation3], 512
    $region45: #{tpu_custom_call.1} parent=1 // pred_fallthru
      _
    // Predicated region
    $region46: #{tpu_custom_call.1} parent=1 // pred_check
      _
    $region47: #{tpu_custom_call.1} parent=1 // pred_check_branch
      %83 = sbr.rel (0) target = $region49
    $region48: #{tpu_custom_call.1} parent=1 // pred_region
      %84 = dma.done [#allocation6], 1536
    $region49: #{tpu_custom_call.1} parent=1 // pred_fallthru
      _
    // Predicated region
    $region50: #{tpu_custom_call.1} parent=1 // pred_check
      _
    $region51: #{tpu_custom_call.1} parent=1 // pred_check_branch
      %86 = sbr.rel (0) target = $region53
    $region52: #{tpu_custom_call.1} parent=1 // pred_region
      %87 = dma.done [#allocation6], 1536
    $region53: #{tpu_custom_call.1} parent=1 // pred_fallthru
      _
    // Predicated region
    $region54: #{tpu_custom_call.1} parent=1 // pred_check
      _
    $region55: #{tpu_custom_call.1} parent=1 // pred_check_branch
      %89 = sbr.rel (0) target = $region57
    $region56: #{tpu_custom_call.1} parent=1 // pred_region
      %90 = dma.done [#allocation9], 3072
    $region57: #{tpu_custom_call.1} parent=1 // pred_fallthru
      _
    %v92 = vld [vmem:[#allocation2] sm:$0xff]
    %v93 = vld [vmem:[#allocation2 + $0x8] sm:$0xff]
    %v94 = vld [vmem:[#allocation2 + $0x10] sm:$0xff]
    %v95 = vld [vmem:[#allocation2 + $0x18] sm:$0xff]
    %v97 = vrot.slane %v95, 7
    %vm102 = vcmask 1040384
    %v103 = vrot.slane %v92, 7
    %v104 = vrot.slane %v93, 7
    %v105 = vsel %vm102, %v103, %v104
    %v106 = vrot.slane %v94, 7
    %v107 = vsel %vm102, %v104, %v106
    %v108 = vsel %vm102, %v106, %v97
    %v113 = vsel %vm102, %v97, %v103
    %v114 = vlaneseq
    %v115 = vshrl.u32 %v114, 7
    %v116 = vadd.s32 %v115, 8
    %v117 = vadd.s32 %v115, 16
    %v118 = vadd.s32 %v115, 24
    %vm119 = vcmp.lt.s32.totalorder %v115, 0
    %v120 = vsub.s32 0, %v115
    %v121 = vsel %vm119, %v120, %v115
    %v122 = vshrl.u32 %v121, 4
    %v123 = vand.u32 %v121, 15
    %v124 = vsub.s32 0, %v123
    %v125 = vsel %vm119, %v124, %v123
    %vm126 = vcmp.lt.s32.totalorder %v116, 0
    %v127 = vsub.s32 0, %v116
    %v128 = vsel %vm126, %v127, %v116
    %v129 = vshrl.u32 %v128, 4
    %v130 = vand.u32 %v128, 15
    %v131 = vsub.s32 0, %v130
    %v132 = vsel %vm126, %v131, %v130
    %vm133 = vcmp.lt.s32.totalorder %v117, 0
    %v134 = vsub.s32 0, %v117
    %v135 = vsel %vm133, %v134, %v117
    %v136 = vshrl.u32 %v135, 4
    %v137 = vand.u32 %v135, 15
    %v138 = vsub.s32 0, %v137
    %v139 = vsel %vm133, %v138, %v137
    %vm140 = vcmp.lt.s32.totalorder %v118, 0
    %v141 = vsub.s32 0, %v118
    %v142 = vsel %vm140, %v141, %v118
    %v143 = vshrl.u32 %v142, 4
    %v144 = vand.u32 %v142, 15
    %v145 = vsub.s32 0, %v144
    %v146 = vsel %vm140, %v145, %v144
    %vm147 = vcmp.ne.s32.totalorder %v125, 0
    %vm148 = vcmp.ne.s32.totalorder %v132, 0
    %vm149 = vcmp.ne.s32.totalorder %v139, 0
    %vm150 = vcmp.ne.s32.totalorder %v146, 0
    %vm151 = vcmp.lt.s32.totalorder %v125, 0
    %vm152 = vcmp.lt.s32.totalorder %v132, 0
    %vm153 = vcmp.lt.s32.totalorder %v139, 0
    %vm154 = vcmp.lt.s32.totalorder %v146, 0
    %vm155 = vmand %vm151, %vm147
    %vm156 = vmand %vm152, %vm148
    %vm157 = vmand %vm153, %vm149
    %vm158 = vmand %vm154, %vm150
    %v159 = vadd.s32 %v125, 16
    %v160 = vadd.s32 %v132, 16
    %v161 = vadd.s32 %v139, 16
    %v162 = vadd.s32 %v146, 16
    %v163 = vsel %vm155, %v159, %v125
    %v164 = vsel %vm156, %v160, %v132
    %v165 = vsel %vm157, %v161, %v139
    %v166 = vsel %vm158, %v162, %v146
    %vm167 = vcmp.ge.s32.totalorder %v163, 1
    %vm168 = vcmp.ge.s32.totalorder %v164, 1
    %vm169 = vcmp.ge.s32.totalorder %v165, 1
    %vm170 = vcmp.ge.s32.totalorder %v166, 1
    %v171 = vsel %vm167, %v113, 0.0
    %v172 = vsel %vm168, %v105, 0.0
    %v173 = vsel %vm169, %v107, 0.0
    %v174 = vsel %vm170, %v108, 0.0
    %vm175 = vcmask 1046528
    %v176 = vrot.slane %v92, 1
    %v177 = vrot.slane %v93, 1
    %v178 = vsel %vm175, %v176, %v177
    %v179 = vrot.slane %v94, 1
    %v180 = vsel %vm175, %v177, %v179
    %v181 = vrot.slane %v95, 1
    %v182 = vsel %vm175, %v179, %v181
    %v188 = vsel %vm175, %v181, %v176
    %vm189 = vcmp.lt.s32.totalorder %v163, 15
    %vm190 = vcmp.lt.s32.totalorder %v164, 15
    %vm191 = vcmp.lt.s32.totalorder %v165, 15
    %vm192 = vcmp.lt.s32.totalorder %v166, 15
    %v193 = vsel %vm189, %v178, 0.0
    %v194 = vsel %vm190, %v180, 0.0
    %v195 = vsel %vm191, %v182, 0.0
    %v196 = vsel %vm192, %v188, 0.0
    %197 = vrot.lane.b32.xlu0 %v92, 64
    %v198 = vpop.permute.xlu0 %197
    %199 = vrot.lane.b32.xlu0 %v93, 64
    %v200 = vpop.permute.xlu0 %199
    %201 = vrot.lane.b32.xlu0 %v94, 64
    %v202 = vpop.permute.xlu0 %201
    %203 = vrot.lane.b32.xlu0 %v95, 64
    %v204 = vpop.permute.xlu0 %203
    %vm209 = vcmask 523264
    %v210 = vsel %vm209, %v171, %v198
    %v211 = vsel %vm209, %v172, %v200
    %v212 = vsel %vm209, %v173, %v202
    %v213 = vsel %vm209, %v174, %v204
    %v214 = vpack.c.bf16 %v211, %v210
    %v215 = vpack.c.bf16 %v194, %v193
    %v216 = vpack.c.bf16 %v213, %v212
    %v217 = vpack.c.bf16 %v196, %v195
    %v218 = vld [vmem:[#allocation5] sm:$0xf]
    %v219 = vld [vmem:[#allocation5 + $0x4] sm:$0xf]
    %v220 = vld [vmem:[#allocation5 + $0x8] sm:$0xf]
    %v221 = vld [vmem:[#allocation5 + $0xc] sm:$0xf]
    %v222 = vld [vmem:[#allocation5 + $0x10] sm:$0xf]
    %v223 = vld [vmem:[#allocation5 + $0x14] sm:$0xf]
    %v224 = vld [vmem:[#allocation5 + $0x18] sm:$0xf]
    %v225 = vld [vmem:[#allocation5 + $0x1c] sm:$0xf]
    %v226 = vld [vmem:[#allocation5 + $0x20] sm:$0xf]
    %v227 = vld [vmem:[#allocation5 + $0x24] sm:$0xf]
    %v228 = vld [vmem:[#allocation5 + $0x28] sm:$0xf]
    %v229 = vld [vmem:[#allocation5 + $0x2c] sm:$0xf]
    %v230 = vld [vmem:[#allocation5 + $0x30] sm:$0xf]
    %v231 = vld [vmem:[#allocation5 + $0x34] sm:$0xf]
    %v232 = vld [vmem:[#allocation5 + $0x38] sm:$0xf]
    %v233 = vld [vmem:[#allocation5 + $0x3c] sm:$0xf]
    %v234 = vld [vmem:[#allocation5 + $0x40] sm:$0xf]
    %v235 = vld [vmem:[#allocation5 + $0x44] sm:$0xf]
    %v236 = vld [vmem:[#allocation5 + $0x48] sm:$0xf]
    %v237 = vld [vmem:[#allocation5 + $0x4c] sm:$0xf]
    %v238 = vld [vmem:[#allocation5 + $0x50] sm:$0xf]
    %v239 = vld [vmem:[#allocation5 + $0x54] sm:$0xf]
    %v240 = vld [vmem:[#allocation5 + $0x58] sm:$0xf]
    %v241 = vld [vmem:[#allocation5 + $0x5c] sm:$0xf]
    %v266 = vunpack.c.l.b16 %v218
    %v267 = vunpack.c.l.b16 %v219
    %v268 = vunpack.c.l.b16 %v220
    %v269 = vunpack.c.l.b16 %v221
    %v270 = vunpack.c.l.b16 %v222
    %v271 = vunpack.c.l.b16 %v223
    %v272 = vunpack.c.l.b16 %v224
    %v273 = vunpack.c.l.b16 %v225
    %v274 = vunpack.c.l.b16 %v226
    %v275 = vunpack.c.l.b16 %v227
    %v276 = vunpack.c.l.b16 %v228
    %v277 = vunpack.c.l.b16 %v229
    %v278 = vunpack.c.l.b16 %v230
    %v279 = vunpack.c.l.b16 %v231
    %v280 = vunpack.c.l.b16 %v232
    %v281 = vunpack.c.l.b16 %v233
    %v282 = vunpack.c.l.b16 %v234
    %v283 = vunpack.c.l.b16 %v235
    %v284 = vunpack.c.l.b16 %v236
    %v285 = vunpack.c.l.b16 %v237
    %v286 = vunpack.c.l.b16 %v238
    %v287 = vunpack.c.l.b16 %v239
    %v288 = vunpack.c.l.b16 %v240
    %v289 = vunpack.c.l.b16 %v241
    %v290 = vpack.c.b16 %v267, %v266
    %v291 = vpack.c.b16 %v269, %v268
    %v292 = vpack.c.b16 %v271, %v270
    %v293 = vpack.c.b16 %v273, %v272
    %v294 = vpack.c.b16 %v275, %v274
    %v295 = vpack.c.b16 %v277, %v276
    %v296 = vpack.c.b16 %v279, %v278
    %v297 = vpack.c.b16 %v281, %v280
    %v298 = vpack.c.b16 %v283, %v282
    %v299 = vpack.c.b16 %v285, %v284
    %v300 = vpack.c.b16 %v287, %v286
    %v301 = vpack.c.b16 %v289, %v288
    %v315 = vsel %vm209, %v215, 0
    %v318 = vsel %vm209, %v217, 0
    %320 = vmatprep.subr.bf16.mxu0 0
    %321 = vmatpush1.bf16.msra.mxu0 %v290
    %322 = vmatprep.subr.bf16.mxu0 0
    %323 = vmatpush1.bf16.msra.mxu0 %v291
    %324 = vmatprep.subr.bf16.mxu0 0
    %325 = vmatpush1.bf16.msra.mxu0 %v292
    %326 = vmatprep.subr.bf16.mxu0 0
    %327 = vmatpush1.bf16.msra.mxu0 %v293
    %328 = vmatprep.subr.bf16.mxu0 0
    %329 = vmatpush1.bf16.msra.mxu0 %v294
    %330 = vmatprep.subr.bf16.mxu0 0
    %331 = vmatpush1.bf16.msra.mxu0 %v295
    %332 = vmatprep.subr.bf16.mxu0 0
    %333 = vmatpush1.bf16.msra.mxu0 %v296
    %334 = vmatprep.subr.bf16.mxu0 0
    %335 = vmatpush1.bf16.msra.mxu0 %v297
    %336 = vmatprep.subr.bf16.mxu0 0
    %337 = vmatpush1.bf16.msra.mxu0 %v298
    %338 = vmatprep.subr.bf16.mxu0 0
    %339 = vmatpush1.bf16.msra.mxu0 %v299
    %340 = vmatprep.subr.bf16.mxu0 0
    %341 = vmatpush1.bf16.msra.mxu0 %v300
    %342 = vmatprep.subr.bf16.mxu0 0
    %343 = vmatpush1.bf16.msra.mxu0 %v301
    %344 = vmatprep.subr.bf16.mxu0 0
    %345 = vmatpush1.bf16.msra.mxu0 0
    %346 = vmatprep.subr.bf16.mxu0 0
    %347 = vmatpush1.bf16.msra.mxu0 0
    %348 = vmatprep.subr.bf16.mxu0 0
    %349 = vmatpush1.bf16.msra.mxu0 0
    %350 = vmatprep.subr.bf16.mxu0 0
    %351 = vmatpush1.bf16.msra.mxu0 0
    %352 = vmatprep.mubr.bf16.mxu0 %v315
    %353 = vmatmul.mubr.bf16.gmra.mrb[0].mxu0 %v214
    %v354 = vpop.f32.mrb[0].mxu0
    %v355 = vadd.f32 0.0, %v354
    %v356 = vpop.f32.mrb[0].mxu0
    %v357 = vpop.f32.mrb[0].mxu0
    %v358 = vadd.f32 0.0, %v357
    %v359 = vpop.f32.mrb[0].mxu0
    %360 = vmatprep.mubr.bf16.mxu0 %v318
    %361 = vmatmul.mubr.bf16.gmra.mrb[0].mxu0 %v216
    %v362 = vpop.f32.mrb[0].mxu0
    %v363 = vadd.f32 0.0, %v362
    %v364 = vpop.f32.mrb[0].mxu0
    %v365 = vpop.f32.mrb[0].mxu0
    %v366 = vadd.f32 0.0, %v365
    %v367 = vpop.f32.mrb[0].mxu0
    %368 = vdwg.mxu0
    %v369 = vld [vmem:[#allocation7] sm:$0xf]
    %v370 = vld [vmem:[#allocation7 + $0x4] sm:$0xf]
    %v371 = vld [vmem:[#allocation7 + $0x8] sm:$0xf]
    %v372 = vld [vmem:[#allocation7 + $0xc] sm:$0xf]
    %v373 = vld [vmem:[#allocation7 + $0x10] sm:$0xf]
    %v374 = vld [vmem:[#allocation7 + $0x14] sm:$0xf]
    %v375 = vld [vmem:[#allocation7 + $0x18] sm:$0xf]
    %v376 = vld [vmem:[#allocation7 + $0x1c] sm:$0xf]
    %v377 = vld [vmem:[#allocation7 + $0x20] sm:$0xf]
    %v378 = vld [vmem:[#allocation7 + $0x24] sm:$0xf]
    %v379 = vld [vmem:[#allocation7 + $0x28] sm:$0xf]
    %v380 = vld [vmem:[#allocation7 + $0x2c] sm:$0xf]
    %v381 = vld [vmem:[#allocation7 + $0x30] sm:$0xf]
    %v382 = vld [vmem:[#allocation7 + $0x34] sm:$0xf]
    %v383 = vld [vmem:[#allocation7 + $0x38] sm:$0xf]
    %v384 = vld [vmem:[#allocation7 + $0x3c] sm:$0xf]
    %v385 = vld [vmem:[#allocation7 + $0x40] sm:$0xf]
    %v386 = vld [vmem:[#allocation7 + $0x44] sm:$0xf]
    %v387 = vld [vmem:[#allocation7 + $0x48] sm:$0xf]
    %v388 = vld [vmem:[#allocation7 + $0x4c] sm:$0xf]
    %v389 = vld [vmem:[#allocation7 + $0x50] sm:$0xf]
    %v390 = vld [vmem:[#allocation7 + $0x54] sm:$0xf]
    %v391 = vld [vmem:[#allocation7 + $0x58] sm:$0xf]
    %v392 = vld [vmem:[#allocation7 + $0x5c] sm:$0xf]
    %v417 = vunpack.c.l.b16 %v369
    %v418 = vunpack.c.l.b16 %v370
    %v419 = vunpack.c.l.b16 %v371
    %v420 = vunpack.c.l.b16 %v372
    %v421 = vunpack.c.l.b16 %v373
    %v422 = vunpack.c.l.b16 %v374
    %v423 = vunpack.c.l.b16 %v375
    %v424 = vunpack.c.l.b16 %v376
    %v425 = vunpack.c.l.b16 %v377
    %v426 = vunpack.c.l.b16 %v378
    %v427 = vunpack.c.l.b16 %v379
    %v428 = vunpack.c.l.b16 %v380
    %v429 = vunpack.c.l.b16 %v381
    %v430 = vunpack.c.l.b16 %v382
    %v431 = vunpack.c.l.b16 %v383
    %v432 = vunpack.c.l.b16 %v384
    %v433 = vunpack.c.l.b16 %v385
    %v434 = vunpack.c.l.b16 %v386
    %v435 = vunpack.c.l.b16 %v387
    %v436 = vunpack.c.l.b16 %v388
    %v437 = vunpack.c.l.b16 %v389
    %v438 = vunpack.c.l.b16 %v390
    %v439 = vunpack.c.l.b16 %v391
    %v440 = vunpack.c.l.b16 %v392
    %v441 = vpack.c.b16 %v418, %v417
    %v442 = vpack.c.b16 %v420, %v419
    %v443 = vpack.c.b16 %v422, %v421
    %v444 = vpack.c.b16 %v424, %v423
    %v445 = vpack.c.b16 %v426, %v425
    %v446 = vpack.c.b16 %v428, %v427
    %v447 = vpack.c.b16 %v430, %v429
    %v448 = vpack.c.b16 %v432, %v431
    %v449 = vpack.c.b16 %v434, %v433
    %v450 = vpack.c.b16 %v436, %v435
    %v451 = vpack.c.b16 %v438, %v437
    %v452 = vpack.c.b16 %v440, %v439
    %465 = vmatprep.subr.bf16.mxu0 0
    %466 = vmatpush1.bf16.msra.mxu0 %v441
    %467 = vmatprep.subr.bf16.mxu0 0
    %468 = vmatpush1.bf16.msra.mxu0 %v442
    %469 = vmatprep.subr.bf16.mxu0 0
    %470 = vmatpush1.bf16.msra.mxu0 %v443
    %471 = vmatprep.subr.bf16.mxu0 0
    %472 = vmatpush1.bf16.msra.mxu0 %v444
    %473 = vmatprep.subr.bf16.mxu0 0
    %474 = vmatpush1.bf16.msra.mxu0 %v445
    %475 = vmatprep.subr.bf16.mxu0 0
    %476 = vmatpush1.bf16.msra.mxu0 %v446
    %477 = vmatprep.subr.bf16.mxu0 0
    %478 = vmatpush1.bf16.msra.mxu0 %v447
    %479 = vmatprep.subr.bf16.mxu0 0
    %480 = vmatpush1.bf16.msra.mxu0 %v448
    %481 = vmatprep.subr.bf16.mxu0 0
    %482 = vmatpush1.bf16.msra.mxu0 %v449
    %483 = vmatprep.subr.bf16.mxu0 0
    %484 = vmatpush1.bf16.msra.mxu0 %v450
    %485 = vmatprep.subr.bf16.mxu0 0
    %486 = vmatpush1.bf16.msra.mxu0 %v451
    %487 = vmatprep.subr.bf16.mxu0 0
    %488 = vmatpush1.bf16.msra.mxu0 %v452
    %489 = vmatprep.subr.bf16.mxu0 0
    %490 = vmatpush1.bf16.msra.mxu0 0
    %491 = vmatprep.subr.bf16.mxu0 0
    %492 = vmatpush1.bf16.msra.mxu0 0
    %493 = vmatprep.subr.bf16.mxu0 0
    %494 = vmatpush1.bf16.msra.mxu0 0
    %495 = vmatprep.subr.bf16.mxu0 0
    %496 = vmatpush1.bf16.msra.mxu0 0
    %497 = vmatprep.mubr.bf16.mxu0 %v315
    %498 = vmatmul.mubr.bf16.gmra.mrb[0].mxu0 %v214
    %v499 = vpop.f32.mrb[0].mxu0
    %v500 = vadd.f32 0.0, %v499
    %v501 = vpop.f32.mrb[0].mxu0
    %v502 = vpop.f32.mrb[0].mxu0
    %v503 = vadd.f32 0.0, %v502
    %v504 = vpop.f32.mrb[0].mxu0
    %505 = vmatprep.mubr.bf16.mxu0 %v318
    %506 = vmatmul.mubr.bf16.gmra.mrb[0].mxu0 %v216
    %v507 = vpop.f32.mrb[0].mxu0
    %v508 = vadd.f32 0.0, %v507
    %v509 = vpop.f32.mrb[0].mxu0
    %v510 = vpop.f32.mrb[0].mxu0
    %v511 = vadd.f32 0.0, %v510
    %v512 = vpop.f32.mrb[0].mxu0
    %513 = vdwg.mxu0
    %v514 = vld [vmem:[%s6] sm:$0x1]
    %v515 = vld [vmem:[%s7] sm:$0x1]
    %v516 = vadd.f32 %v500, %v503
    %v517 = vadd.f32 %v516, %v508
    %v518 = vadd.f32 %v517, %v511
    %v519 = vrot.slane %v518, 4
    %v520 = vadd.f32 %v518, %v519
    %v521 = vrot.slane %v520, 2
    %v522 = vadd.f32 %v520, %v521
    %v523 = vrot.slane %v522, 1
    %v524 = vadd.f32 %v522, %v523
    %v525 = vmul.f32 %v500, %v500
    %v526 = vmul.f32 %v503, %v503
    %v527 = vmul.f32 %v508, %v508
    %v528 = vmul.f32 %v511, %v511
    %v529 = vadd.f32 %v525, %v526
    %v530 = vadd.f32 %v529, %v527
    %v531 = vadd.f32 %v530, %v528
    %v532 = vrot.slane %v531, 4
    %v533 = vadd.f32 %v531, %v532
    %v534 = vrot.slane %v533, 2
    %v535 = vadd.f32 %v533, %v534
    %v536 = vrot.slane %v535, 1
    %v537 = vadd.f32 %v535, %v536
    %538 = vrot.lane.b32.xlu0 %v524, 8
    %v539 = vpop.permute.xlu0 %538
    %v540 = vadd.f32 %v524, %v539
    %541 = vrot.lane.b32.xlu0 %v537, 8
    %v542 = vpop.permute.xlu0 %541
    %v543 = vadd.f32 %v537, %v542
    %544 = vrot.lane.b32.xlu0 %v540, 16
    %v545 = vpop.permute.xlu0 %544
    %v546 = vadd.f32 %v540, %v545
    %547 = vrot.lane.b32.xlu0 %v543, 16
    %v548 = vpop.permute.xlu0 %547
    %v549 = vadd.f32 %v543, %v548
    %550 = vrot.lane.b32.xlu0 %v546, 32
    %v551 = vpop.permute.xlu0 %550
    %v552 = vadd.f32 %v546, %v551
    %553 = vrot.lane.b32.xlu0 %v549, 32
    %v554 = vpop.permute.xlu0 %553
    %v555 = vadd.f32 %v549, %v554
    %556 = vrot.lane.b32.xlu0 %v552, 64
    %v557 = vpop.permute.xlu0 %556
    %v558 = vadd.f32 %v552, %v557
    %559 = vrot.lane.b32.xlu0 %v555, 64
    %v560 = vpop.permute.xlu0 %559
    %v561 = vadd.f32 %v555, %v560
    %v562 = vmul.f32 %v558, 0.001953125
    %v563 = vmul.f32 %v561, 0.001953125
    %v564 = vmul.f32 %v562, %v562
    %v565 = vsub.f32 %v563, %v564
    %v566 = vmax.f32 %v565, 0.0
    %v567 = vadd.f32 %v566, 1e-05
    %v568 = vrsqrt.pop %v567
    %v569 = vmul.f32 %v514, %v568
    %v570 = vmul.f32 %v562, %v569
    %v571 = vsub.f32 %v515, %v570
    %v573 = vlaneseq
    %v574 = vshrl.u32 %v573, 7
    %v575 = vsub.s32 0, %v574
    %v576 = vrot.slane %v569, %v575
    %v578 = vmul.f32 %v500, %v576
    %v579 = vmul.f32 %v503, %v576
    %v580 = vmul.f32 %v508, %v576
    %v581 = vmul.f32 %v511, %v576
    %v583 = vlaneseq
    %v584 = vshrl.u32 %v583, 7
    %v585 = vsub.s32 0, %v584
    %v586 = vrot.slane %v571, %v585
    %v588 = vadd.f32 %v578, %v586
    %v589 = vadd.f32 %v579, %v586
    %v590 = vadd.f32 %v580, %v586
    %v591 = vadd.f32 %v581, %v586
    %v592 = vld [vmem:[%s4] sm:$0x1]
    %v593 = vld [vmem:[%s5] sm:$0x1]
    %v594 = vadd.f32 %v355, %v358
    %v595 = vadd.f32 %v594, %v363
    %v596 = vadd.f32 %v595, %v366
    %v597 = vrot.slane %v596, 4
    %v598 = vadd.f32 %v596, %v597
    %v599 = vrot.slane %v598, 2
    %v600 = vadd.f32 %v598, %v599
    %v601 = vrot.slane %v600, 1
    %v602 = vadd.f32 %v600, %v601
    %v603 = vmul.f32 %v355, %v355
    %v604 = vmul.f32 %v358, %v358
    %v605 = vmul.f32 %v363, %v363
    %v606 = vmul.f32 %v366, %v366
    %v607 = vadd.f32 %v603, %v604
    %v608 = vadd.f32 %v607, %v605
    %v609 = vadd.f32 %v608, %v606
    %v610 = vrot.slane %v609, 4
    %v611 = vadd.f32 %v609, %v610
    %v612 = vrot.slane %v611, 2
    %v613 = vadd.f32 %v611, %v612
    %v614 = vrot.slane %v613, 1
    %v615 = vadd.f32 %v613, %v614
    %616 = vrot.lane.b32.xlu0 %v602, 8
    %v617 = vpop.permute.xlu0 %616
    %v618 = vadd.f32 %v602, %v617
    %619 = vrot.lane.b32.xlu0 %v615, 8
    %v620 = vpop.permute.xlu0 %619
    %v621 = vadd.f32 %v615, %v620
    %622 = vrot.lane.b32.xlu0 %v618, 16
    %v623 = vpop.permute.xlu0 %622
    %v624 = vadd.f32 %v618, %v623
    %625 = vrot.lane.b32.xlu0 %v621, 16
    %v626 = vpop.permute.xlu0 %625
    %v627 = vadd.f32 %v621, %v626
    %628 = vrot.lane.b32.xlu0 %v624, 32
    %v629 = vpop.permute.xlu0 %628
    %v630 = vadd.f32 %v624, %v629
    %631 = vrot.lane.b32.xlu0 %v627, 32
    %v632 = vpop.permute.xlu0 %631
    %v633 = vadd.f32 %v627, %v632
    %634 = vrot.lane.b32.xlu0 %v630, 64
    %v635 = vpop.permute.xlu0 %634
    %v636 = vadd.f32 %v630, %v635
    %637 = vrot.lane.b32.xlu0 %v633, 64
    %v638 = vpop.permute.xlu0 %637
    %v639 = vadd.f32 %v633, %v638
    %v640 = vmul.f32 %v636, 0.001953125
    %v641 = vmul.f32 %v639, 0.001953125
    %v642 = vmul.f32 %v640, %v640
    %v643 = vsub.f32 %v641, %v642
    %v644 = vmax.f32 %v643, 0.0
    %v645 = vadd.f32 %v644, 1e-05
    %v646 = vrsqrt.pop %v645
    %v647 = vmul.f32 %v592, %v646
    %v648 = vmul.f32 %v640, %v647
    %v649 = vsub.f32 %v593, %v648
    %v651 = vlaneseq
    %v652 = vshrl.u32 %v651, 7
    %v653 = vsub.s32 0, %v652
    %v654 = vrot.slane %v647, %v653
    %v656 = vmul.f32 %v355, %v654
    %v657 = vmul.f32 %v358, %v654
    %v658 = vmul.f32 %v363, %v654
    %v659 = vmul.f32 %v366, %v654
    %v661 = vlaneseq
    %v662 = vshrl.u32 %v661, 7
    %v663 = vsub.s32 0, %v662
    %v664 = vrot.slane %v649, %v663
    %v666 = vadd.f32 %v656, %v664
    %v667 = vadd.f32 %v657, %v664
    %v668 = vadd.f32 %v658, %v664
    %v669 = vadd.f32 %v659, %v664
    %v670 = vmax.f32 %v666, 0.0
    %v671 = vmax.f32 %v667, 0.0
    %v672 = vmax.f32 %v668, 0.0
    %v673 = vmax.f32 %v669, 0.0
    %v675 = vrot.slane %v673, 7
    %v680 = vrot.slane %v670, 7
    %v681 = vrot.slane %v671, 7
    %v682 = vsel %vm102, %v680, %v681
    %v683 = vrot.slane %v672, 7
    %v684 = vsel %vm102, %v681, %v683
    %v685 = vsel %vm102, %v683, %v675
    %v690 = vsel %vm102, %v675, %v680
    %v691 = vsel %vm167, %v690, 0.0
    %v692 = vsel %vm168, %v682, 0.0
    %v693 = vsel %vm169, %v684, 0.0
    %v694 = vsel %vm170, %v685, 0.0
    %v695 = vrot.slane %v670, 1
    %v696 = vrot.slane %v671, 1
    %v697 = vsel %vm175, %v695, %v696
    %v698 = vrot.slane %v672, 1
    %v699 = vsel %vm175, %v696, %v698
    %v700 = vrot.slane %v673, 1
    %v701 = vsel %vm175, %v698, %v700
    %v707 = vsel %vm175, %v700, %v695
    %v708 = vsel %vm189, %v697, 0.0
    %v709 = vsel %vm190, %v699, 0.0
    %v710 = vsel %vm191, %v701, 0.0
    %v711 = vsel %vm192, %v707, 0.0
    %v712 = vpack.c.bf16 %v692, %v691
    %v713 = vpack.c.bf16 %v671, %v670
    %v714 = vpack.c.bf16 %v709, %v708
    %v715 = vpack.c.bf16 %v694, %v693
    %v716 = vpack.c.bf16 %v673, %v672
    %v717 = vpack.c.bf16 %v711, %v710
    %v718 = vld [vmem:[#allocation8] sm:$0xf]
    %v719 = vld [vmem:[#allocation8 + $0x4] sm:$0xf]
    %v720 = vld [vmem:[#allocation8 + $0x8] sm:$0xf]
    %v721 = vld [vmem:[#allocation8 + $0xc] sm:$0xf]
    %v722 = vld [vmem:[#allocation8 + $0x10] sm:$0xf]
    %v723 = vld [vmem:[#allocation8 + $0x14] sm:$0xf]
    %v724 = vld [vmem:[#allocation8 + $0x18] sm:$0xf]
    %v725 = vld [vmem:[#allocation8 + $0x1c] sm:$0xf]
    %v726 = vld [vmem:[#allocation8 + $0x20] sm:$0xf]
    %v727 = vld [vmem:[#allocation8 + $0x24] sm:$0xf]
    %v728 = vld [vmem:[#allocation8 + $0x28] sm:$0xf]
    %v729 = vld [vmem:[#allocation8 + $0x2c] sm:$0xf]
    %v730 = vld [vmem:[#allocation8 + $0x30] sm:$0xf]
    %v731 = vld [vmem:[#allocation8 + $0x34] sm:$0xf]
    %v732 = vld [vmem:[#allocation8 + $0x38] sm:$0xf]
    %v733 = vld [vmem:[#allocation8 + $0x3c] sm:$0xf]
    %v734 = vld [vmem:[#allocation8 + $0x40] sm:$0xf]
    %v735 = vld [vmem:[#allocation8 + $0x44] sm:$0xf]
    %v736 = vld [vmem:[#allocation8 + $0x48] sm:$0xf]
    %v737 = vld [vmem:[#allocation8 + $0x4c] sm:$0xf]
    %v738 = vld [vmem:[#allocation8 + $0x50] sm:$0xf]
    %v739 = vld [vmem:[#allocation8 + $0x54] sm:$0xf]
    %v740 = vld [vmem:[#allocation8 + $0x58] sm:$0xf]
    %v741 = vld [vmem:[#allocation8 + $0x5c] sm:$0xf]
    %v742 = vld [vmem:[#allocation8 + $0x60] sm:$0xf]
    %v743 = vld [vmem:[#allocation8 + $0x64] sm:$0xf]
    %v744 = vld [vmem:[#allocation8 + $0x68] sm:$0xf]
    %v745 = vld [vmem:[#allocation8 + $0x6c] sm:$0xf]
    %v746 = vld [vmem:[#allocation8 + $0x70] sm:$0xf]
    %v747 = vld [vmem:[#allocation8 + $0x74] sm:$0xf]
    %v748 = vld [vmem:[#allocation8 + $0x78] sm:$0xf]
    %v749 = vld [vmem:[#allocation8 + $0x7c] sm:$0xf]
    %v750 = vld [vmem:[#allocation8 + $0x80] sm:$0xf]
    %v751 = vld [vmem:[#allocation8 + $0x84] sm:$0xf]
    %v752 = vld [vmem:[#allocation8 + $0x88] sm:$0xf]
    %v753 = vld [vmem:[#allocation8 + $0x8c] sm:$0xf]
    %v754 = vld [vmem:[#allocation8 + $0x90] sm:$0xf]
    %v755 = vld [vmem:[#allocation8 + $0x94] sm:$0xf]
    %v756 = vld [vmem:[#allocation8 + $0x98] sm:$0xf]
    %v757 = vld [vmem:[#allocation8 + $0x9c] sm:$0xf]
    %v758 = vld [vmem:[#allocation8 + $0xa0] sm:$0xf]
    %v759 = vld [vmem:[#allocation8 + $0xa4] sm:$0xf]
    %v760 = vld [vmem:[#allocation8 + $0xa8] sm:$0xf]
    %v761 = vld [vmem:[#allocation8 + $0xac] sm:$0xf]
    %v762 = vld [vmem:[#allocation8 + $0xb0] sm:$0xf]
    %v763 = vld [vmem:[#allocation8 + $0xb4] sm:$0xf]
    %v764 = vld [vmem:[#allocation8 + $0xb8] sm:$0xf]
    %v765 = vld [vmem:[#allocation8 + $0xbc] sm:$0xf]
    %v814 = vunpack.c.l.b16 %v718
    %v815 = vunpack.c.l.b16 %v719
    %v816 = vunpack.c.l.b16 %v720
    %v817 = vunpack.c.l.b16 %v721
    %v818 = vunpack.c.l.b16 %v722
    %v819 = vunpack.c.l.b16 %v723
    %v820 = vunpack.c.l.b16 %v724
    %v821 = vunpack.c.l.b16 %v725
    %v822 = vunpack.c.l.b16 %v726
    %v823 = vunpack.c.l.b16 %v727
    %v824 = vunpack.c.l.b16 %v728
    %v825 = vunpack.c.l.b16 %v729
    %v826 = vunpack.c.l.b16 %v730
    %v827 = vunpack.c.l.b16 %v731
    %v828 = vunpack.c.l.b16 %v732
    %v829 = vunpack.c.l.b16 %v733
    %v830 = vunpack.c.l.b16 %v734
    %v831 = vunpack.c.l.b16 %v735
    %v832 = vunpack.c.l.b16 %v736
    %v833 = vunpack.c.l.b16 %v737
    %v834 = vunpack.c.l.b16 %v738
    %v835 = vunpack.c.l.b16 %v739
    %v836 = vunpack.c.l.b16 %v740
    %v837 = vunpack.c.l.b16 %v741
    %v838 = vunpack.c.l.b16 %v742
    %v839 = vunpack.c.l.b16 %v743
    %v840 = vunpack.c.l.b16 %v744
    %v841 = vunpack.c.l.b16 %v745
    %v842 = vunpack.c.l.b16 %v746
    %v843 = vunpack.c.l.b16 %v747
    %v844 = vunpack.c.l.b16 %v748
    %v845 = vunpack.c.l.b16 %v749
    %v846 = vunpack.c.l.b16 %v750
    %v847 = vunpack.c.l.b16 %v751
    %v848 = vunpack.c.l.b16 %v752
    %v849 = vunpack.c.l.b16 %v753
    %v850 = vunpack.c.l.b16 %v754
    %v851 = vunpack.c.l.b16 %v755
    %v852 = vunpack.c.l.b16 %v756
    %v853 = vunpack.c.l.b16 %v757
    %v854 = vunpack.c.l.b16 %v758
    %v855 = vunpack.c.l.b16 %v759
    %v856 = vunpack.c.l.b16 %v760
    %v857 = vunpack.c.l.b16 %v761
    %v858 = vunpack.c.l.b16 %v762
    %v859 = vunpack.c.l.b16 %v763
    %v860 = vunpack.c.l.b16 %v764
    %v861 = vunpack.c.l.b16 %v765
    %v862 = vpack.c.b16 %v815, %v814
    %v863 = vpack.c.b16 %v817, %v816
    %v864 = vpack.c.b16 %v819, %v818
    %v865 = vpack.c.b16 %v821, %v820
    %v866 = vpack.c.b16 %v823, %v822
    %v867 = vpack.c.b16 %v825, %v824
    %v868 = vpack.c.b16 %v827, %v826
    %v869 = vpack.c.b16 %v829, %v828
    %v870 = vpack.c.b16 %v831, %v830
    %v871 = vpack.c.b16 %v833, %v832
    %v872 = vpack.c.b16 %v835, %v834
    %v873 = vpack.c.b16 %v837, %v836
    %v874 = vpack.c.b16 %v839, %v838
    %v875 = vpack.c.b16 %v841, %v840
    %v876 = vpack.c.b16 %v843, %v842
    %v877 = vpack.c.b16 %v845, %v844
    %v878 = vpack.c.b16 %v847, %v846
    %v879 = vpack.c.b16 %v849, %v848
    %v880 = vpack.c.b16 %v851, %v850
    %v881 = vpack.c.b16 %v853, %v852
    %v882 = vpack.c.b16 %v855, %v854
    %v883 = vpack.c.b16 %v857, %v856
    %v884 = vpack.c.b16 %v859, %v858
    %v885 = vpack.c.b16 %v861, %v860
    %910 = vmatprep.subr.bf16.mxu0 0
    %911 = vmatpush1.bf16.msra.mxu0 %v862
    %912 = vmatprep.subr.bf16.mxu0 0
    %913 = vmatpush1.bf16.msra.mxu0 %v863
    %914 = vmatprep.subr.bf16.mxu0 0
    %915 = vmatpush1.bf16.msra.mxu0 %v864
    %916 = vmatprep.subr.bf16.mxu0 0
    %917 = vmatpush1.bf16.msra.mxu0 %v865
    %918 = vmatprep.subr.bf16.mxu0 0
    %919 = vmatpush1.bf16.msra.mxu0 %v866
    %920 = vmatprep.subr.bf16.mxu0 0
    %921 = vmatpush1.bf16.msra.mxu0 %v867
    %922 = vmatprep.subr.bf16.mxu0 0
    %923 = vmatpush1.bf16.msra.mxu0 %v868
    %924 = vmatprep.subr.bf16.mxu0 0
    %925 = vmatpush1.bf16.msra.mxu0 %v869
    %926 = vmatprep.subr.bf16.mxu0 0
    %927 = vmatpush1.bf16.msra.mxu0 %v870
    %928 = vmatprep.subr.bf16.mxu0 0
    %929 = vmatpush1.bf16.msra.mxu0 %v871
    %930 = vmatprep.subr.bf16.mxu0 0
    %931 = vmatpush1.bf16.msra.mxu0 %v872
    %932 = vmatprep.subr.bf16.mxu0 0
    %933 = vmatpush1.bf16.msra.mxu0 %v873
    %934 = vmatprep.subr.bf16.mxu0 0
    %935 = vmatpush1.bf16.msra.mxu0 %v874
    %936 = vmatprep.subr.bf16.mxu0 0
    %937 = vmatpush1.bf16.msra.mxu0 %v875
    %938 = vmatprep.subr.bf16.mxu0 0
    %939 = vmatpush1.bf16.msra.mxu0 %v876
    %940 = vmatprep.subr.bf16.mxu0 0
    %941 = vmatpush1.bf16.msra.mxu0 %v877
    %942 = vmatprep.mubr.bf16.mxu0 %v713
    %943 = vmatmul.mubr.bf16.gmra.mrb[0].mxu0 %v712
    %v944 = vpop.f32.mrb[0].mxu0
    %v945 = vadd.f32 0.0, %v944
    %v946 = vpop.f32.mrb[0].mxu0
    %v947 = vpop.f32.mrb[0].mxu0
    %v948 = vadd.f32 0.0, %v947
    %v949 = vpop.f32.mrb[0].mxu0
    %950 = vmatprep.mubr.bf16.mxu0 %v716
    %951 = vmatmul.mubr.bf16.gmra.mrb[0].mxu0 %v715
    %v952 = vpop.f32.mrb[0].mxu0
    %v953 = vadd.f32 0.0, %v952
    %v954 = vpop.f32.mrb[0].mxu0
    %v955 = vpop.f32.mrb[0].mxu0
    %v956 = vadd.f32 0.0, %v955
    %v957 = vpop.f32.mrb[0].mxu0
    %958 = vdwg.mxu0
    %959 = vmatprep.subr.bf16.mxu0 0
    %960 = vmatpush1.bf16.msra.mxu0 %v878
    %961 = vmatprep.subr.bf16.mxu0 0
    %962 = vmatpush1.bf16.msra.mxu0 %v879
    %963 = vmatprep.subr.bf16.mxu0 0
    %964 = vmatpush1.bf16.msra.mxu0 %v880
    %965 = vmatprep.subr.bf16.mxu0 0
    %966 = vmatpush1.bf16.msra.mxu0 %v881
    %967 = vmatprep.subr.bf16.mxu0 0
    %968 = vmatpush1.bf16.msra.mxu0 %v882
    %969 = vmatprep.subr.bf16.mxu0 0
    %970 = vmatpush1.bf16.msra.mxu0 %v883
    %971 = vmatprep.subr.bf16.mxu0 0
    %972 = vmatpush1.bf16.msra.mxu0 %v884
    %973 = vmatprep.subr.bf16.mxu0 0
    %974 = vmatpush1.bf16.msra.mxu0 %v885
    %975 = vmatprep.subr.bf16.mxu0 0
    %976 = vmatpush1.bf16.msra.mxu0 0
    %977 = vmatprep.subr.bf16.mxu0 0
    %978 = vmatpush1.bf16.msra.mxu0 0
    %979 = vmatprep.subr.bf16.mxu0 0
    %980 = vmatpush1.bf16.msra.mxu0 0
    %981 = vmatprep.subr.bf16.mxu0 0
    %982 = vmatpush1.bf16.msra.mxu0 0
    %983 = vmatprep.subr.bf16.mxu0 0
    %984 = vmatpush1.bf16.msra.mxu0 0
    %985 = vmatprep.subr.bf16.mxu0 0
    %986 = vmatpush1.bf16.msra.mxu0 0
    %987 = vmatprep.subr.bf16.mxu0 0
    %988 = vmatpush1.bf16.msra.mxu0 0
    %989 = vmatprep.subr.bf16.mxu0 0
    %990 = vmatpush1.bf16.msra.mxu0 0
    %991 = vmatprep.mubr.bf16.mxu0 0
    %992 = vmatmul.mubr.bf16.gmra.mrb[0].mxu0 %v714
    %v993 = vpop.f32.mrb[0].mxu0
    %v994 = vadd.f32 %v945, %v993
    %v995 = vpop.f32.mrb[0].mxu0
    %v996 = vpop.f32.mrb[0].mxu0
    %v997 = vadd.f32 %v948, %v996
    %v998 = vpop.f32.mrb[0].mxu0
    %999 = vmatprep.mubr.bf16.mxu0 0
    %1000 = vmatmul.mubr.bf16.gmra.mrb[0].mxu0 %v717
    %v1001 = vpop.f32.mrb[0].mxu0
    %v1002 = vadd.f32 %v953, %v1001
    %v1003 = vpop.f32.mrb[0].mxu0
    %v1004 = vpop.f32.mrb[0].mxu0
    %v1005 = vadd.f32 %v956, %v1004
    %v1006 = vpop.f32.mrb[0].mxu0
    %1007 = vdwg.mxu0
    %v1008 = vld [vmem:[%s8] sm:$0x1]
    %v1009 = vld [vmem:[%s9] sm:$0x1]
    %v1010 = vadd.f32 %v994, %v997
    %v1011 = vadd.f32 %v1010, %v1002
    %v1012 = vadd.f32 %v1011, %v1005
    %v1013 = vrot.slane %v1012, 4
    %v1014 = vadd.f32 %v1012, %v1013
    %v1015 = vrot.slane %v1014, 2
    %v1016 = vadd.f32 %v1014, %v1015
    %v1017 = vrot.slane %v1016, 1
    %v1018 = vadd.f32 %v1016, %v1017
    %v1019 = vmul.f32 %v994, %v994
    %v1020 = vmul.f32 %v997, %v997
    %v1021 = vmul.f32 %v1002, %v1002
    %v1022 = vmul.f32 %v1005, %v1005
    %v1023 = vadd.f32 %v1019, %v1020
    %v1024 = vadd.f32 %v1023, %v1021
    %v1025 = vadd.f32 %v1024, %v1022
    %v1026 = vrot.slane %v1025, 4
    %v1027 = vadd.f32 %v1025, %v1026
    %v1028 = vrot.slane %v1027, 2
    %v1029 = vadd.f32 %v1027, %v1028
    %v1030 = vrot.slane %v1029, 1
    %v1031 = vadd.f32 %v1029, %v1030
    %1032 = vrot.lane.b32.xlu0 %v1018, 8
    %v1033 = vpop.permute.xlu0 %1032
    %v1034 = vadd.f32 %v1018, %v1033
    %1035 = vrot.lane.b32.xlu0 %v1031, 8
    %v1036 = vpop.permute.xlu0 %1035
    %v1037 = vadd.f32 %v1031, %v1036
    %1038 = vrot.lane.b32.xlu0 %v1034, 16
    %v1039 = vpop.permute.xlu0 %1038
    %v1040 = vadd.f32 %v1034, %v1039
    %1041 = vrot.lane.b32.xlu0 %v1037, 16
    %v1042 = vpop.permute.xlu0 %1041
    %v1043 = vadd.f32 %v1037, %v1042
    %1044 = vrot.lane.b32.xlu0 %v1040, 32
    %v1045 = vpop.permute.xlu0 %1044
    %v1046 = vadd.f32 %v1040, %v1045
    %1047 = vrot.lane.b32.xlu0 %v1043, 32
    %v1048 = vpop.permute.xlu0 %1047
    %v1049 = vadd.f32 %v1043, %v1048
    %1050 = vrot.lane.b32.xlu0 %v1046, 64
    %v1051 = vpop.permute.xlu0 %1050
    %v1052 = vadd.f32 %v1046, %v1051
    %1053 = vrot.lane.b32.xlu0 %v1049, 64
    %v1054 = vpop.permute.xlu0 %1053
    %v1055 = vadd.f32 %v1049, %v1054
    %v1056 = vmul.f32 %v1052, 0.001953125
    %v1057 = vmul.f32 %v1055, 0.001953125
    %v1058 = vmul.f32 %v1056, %v1056
    %v1059 = vsub.f32 %v1057, %v1058
    %v1060 = vmax.f32 %v1059, 0.0
    %v1061 = vadd.f32 %v1060, 1e-05
    %v1062 = vrsqrt.pop %v1061
    %v1063 = vmul.f32 %v1008, %v1062
    %v1064 = vmul.f32 %v1056, %v1063
    %v1065 = vsub.f32 %v1009, %v1064
    %v1067 = vlaneseq
    %v1068 = vshrl.u32 %v1067, 7
    %v1069 = vsub.s32 0, %v1068
    %v1070 = vrot.slane %v1063, %v1069
    %v1072 = vmul.f32 %v994, %v1070
    %v1073 = vmul.f32 %v997, %v1070
    %v1074 = vmul.f32 %v1002, %v1070
    %v1075 = vmul.f32 %v1005, %v1070
    %v1077 = vlaneseq
    %v1078 = vshrl.u32 %v1077, 7
    %v1079 = vsub.s32 0, %v1078
    %v1080 = vrot.slane %v1065, %v1079
    %v1082 = vadd.f32 %v1072, %v1080
    %v1083 = vadd.f32 %v1073, %v1080
    %v1084 = vadd.f32 %v1074, %v1080
    %v1085 = vadd.f32 %v1075, %v1080
    %v1086 = vadd.f32 %v1082, %v588
    %v1087 = vadd.f32 %v1083, %v589
    %v1088 = vadd.f32 %v1084, %v590
    %v1089 = vadd.f32 %v1085, %v591
    %v1090 = vmax.f32 %v1086, 0.0
    %v1091 = vmax.f32 %v1087, 0.0
    %v1092 = vmax.f32 %v1088, 0.0
    %v1093 = vmax.f32 %v1089, 0.0
    %1094 = vst [vmem:[#allocation10] sm:$0xff] %v1090
    %1095 = vst [vmem:[#allocation10 + $0x8] sm:$0xff] %v1091
    %1096 = vst [vmem:[#allocation10 + $0x10] sm:$0xff] %v1092
    %1097 = vst [vmem:[#allocation10 + $0x18] sm:$0xff] %v1093
    // Predicated region
    $region58: #{tpu_custom_call.1} parent=1 // pred_check
      _
    $region59: #{tpu_custom_call.1} parent=1 // pred_check_branch
      %1099 = sbr.rel (0) target = $region61
    $region60: #{tpu_custom_call.1} parent=1 // pred_region
      %s1101 = ssub.s32 512, 512
      %1102 = vsyncadd [#allocation4], %s1101
      %s1103 = sshll.u32 [#allocation10], 4
      %s1104 = int_to_ptr.vmem [resolvable:$true] %s1103
      %1109 = dma.vmem_to_hbm [thread:$0]  %s1104, 512, %s10, [#allocation4], 128, 128, 8
    $region61: #{tpu_custom_call.1} parent=1 // pred_fallthru
      _
    // Predicated region
    $region62: #{tpu_custom_call.1} parent=1 // pred_check
      _
    $region63: #{tpu_custom_call.1} parent=1 // pred_check_branch
      %1111 = sbr.rel (0) target = $region65
    $region64: #{tpu_custom_call.1} parent=1 // pred_region
      %1112 = dma.done [#allocation4], 512
    $region65: #{tpu_custom_call.1} parent=1 // pred_fallthru
      _
    %1113 = vsyncpa [#allocation3], 1
    %1114 = vsyncpa [#allocation6], 1
    %1115 = vsyncpa [#allocation9], 1
    %1116 = vsyncpa [#allocation4], 1

</llo_original>
